<compile_context>
chip_gen: v7x
topology: tpu7x:2x2x1
jax: 0.10.0
libtpu: 0.0.40
codegen_flags: <defaults>
</compile_context>

<pallas_src>
import math
import functools

import jax
import jax.numpy as jnp
from jax import lax
from jax.experimental import pallas as pl
from jax.experimental.pallas import tpu as pltpu


def _layer_norm(x, gamma, beta, eps):
    # x: (T, D), gamma/beta: (1, D); unbiased=False variance, eps inside sqrt.
    mean = jnp.mean(x, axis=-1, keepdims=True)
    centered = x - mean
    var = jnp.mean(centered * centered, axis=-1, keepdims=True)
    return gamma * (centered * lax.rsqrt(var + eps)) + beta


def encoder_layer_kernel(
    x_ref,                                        # (S, D)  full sequence for batch b
    wq_ref, bq_ref, wk_ref, bk_ref, wv_ref, bv_ref, wc_ref, bc_ref,
    ln1_g_ref, ln1_b_ref,
    w1_ref, fb1_ref, w2_ref, fb2_ref,
    ln2_g_ref, ln2_b_ref,
    o_ref,                                        # (TQ, D) query tile of the output
    q_scr, k_scr, v_scr, attn_scr,                # VMEM scratch
    *, n_head, eps, tq, compute_dtype,
):
    qi = pl.program_id(1)
    _, S, d_t = k_scr.shape
    scale = 1.0 / math.sqrt(d_t)
    cd = compute_dtype

    # Hoisted single loads (JAX does not CSE broadcast_in_dim).
    bq = bq_ref[...]
    bc = bc_ref[...]
    g1, be1 = ln1_g_ref[...], ln1_b_ref[...]
    g2, be2 = ln2_g_ref[...], ln2_b_ref[...]
    fb1, fb2 = fb1_ref[...], fb2_ref[...]

    # --- K / V projections: computed once per batch element (first query tile)
    #     and stored head-major in VMEM scratch, reused by later query tiles. ---
    @pl.when(qi == 0)
    def _():
        x_all = x_ref[...].astype(cd)                                    # (S, D)
        k_full = jnp.dot(x_all, wk_ref[...],
                         preferred_element_type=jnp.float32) + bk_ref[...]
        v_full = jnp.dot(x_all, wv_ref[...],
                         preferred_element_type=jnp.float32) + bv_ref[...]
        for h in range(n_head):                                          # static unroll
            k_scr[h] = k_full[:, h * d_t:(h + 1) * d_t].astype(cd)
            v_scr[h] = v_full[:, h * d_t:(h + 1) * d_t].astype(cd)

    # --- Q projection for this query tile (head-major scratch). ---
    row0 = pl.multiple_of(qi * tq, tq)
    x_q = x_ref[pl.ds(row0, tq), :]                                      # (TQ, D)
    x_q_f32 = x_q.astype(jnp.float32)
    q_full = jnp.dot(x_q.astype(cd), wq_ref[...],
                     preferred_element_type=jnp.float32) + bq
    # Fold the 1/sqrt(d_t) scale into Q (TQ, D) instead of the (H, TQ, S) score.
    q_full = q_full * scale
    for h in range(n_head):
        q_scr[h] = q_full[:, h * d_t:(h + 1) * d_t].astype(cd)

    # --- Scaled dot-product attention, batched over heads (leading batch dim,
    #     contraction over the last dims: no explicit transpose of K). ---
    score = jnp.einsum("hqd,hkd->hqk", q_scr[...], k_scr[...],
                       preferred_element_type=jnp.float32)               # (H, TQ, S)
    score = score - jnp.max(score, axis=-1, keepdims=True)
    p = jnp.exp(score)
    p = p * pl.reciprocal(jnp.sum(p, axis=-1, keepdims=True), approx=True)
    o_h = jnp.einsum("hqk,hkd->hqd", p.astype(cd), v_scr[...],
                     preferred_element_type=jnp.float32)                 # (H, TQ, d_t)

    # Heads written straight into a (TQ, D) scratch slab (no concatenate),
    # then one full-width output projection on the MXU.
    for h in range(n_head):
        attn_scr[:, h * d_t:(h + 1) * d_t] = o_h[h].astype(cd)
    ctx = jnp.dot(attn_scr[...], wc_ref[...],
                  preferred_element_type=jnp.float32) + bc               # (TQ, D)

    # --- Residual + LayerNorm 1 (dropout1 = identity in eval mode). ---
    x1 = _layer_norm(ctx + x_q_f32, g1, be1, eps)

    # --- Position-wise feed-forward network. ---
    h1 = jnp.dot(x1.astype(cd), w1_ref[...],
                 preferred_element_type=jnp.float32) + fb1
    h1 = jnp.maximum(h1, 0.0)
    y = jnp.dot(h1.astype(cd), w2_ref[...],
                preferred_element_type=jnp.float32) + fb2

    # --- Residual + LayerNorm 2 (dropout2 = identity in eval mode). ---
    x2 = _layer_norm(y + x1, g2, be2, eps)
    o_ref[...] = x2.astype(o_ref.dtype)


def _pick_q_tile(seq_len):
    if seq_len <= 256:
        return seq_len
    for t in (512, 256, 128, 64, 32, 16, 8):
        if seq_len % t == 0:
            return t
    return seq_len


def encoder_layer(x, params, *, n_head, eps=1e-12,
                  compute_dtype=jnp.float32, q_tile=None):
    B, S, D = x.shape
    H = params["w1"].shape[1]
    assert D % n_head == 0
    d_t = D // n_head
    tq = q_tile if q_tile is not None else _pick_q_tile(S)
    assert S % tq == 0
    n_q = S // tq

    cd = jnp.dtype(compute_dtype)
    f32 = jnp.float32
    # MXU operands (weights) are cast once, host-side; accumulation stays f32.
    wq, wk, wv, wc = (params[k].astype(cd) for k in ("wq", "wk", "wv", "wc"))
    w1, w2 = params["w1"].astype(cd), params["w2"].astype(cd)
    bq, bk, bv, bc = (params[k].astype(f32) for k in ("bq", "bk", "bv", "bc"))
    fb1, fb2 = params["b1"].astype(f32), params["b2"].astype(f32)
    g1, be1 = params["gamma1"].astype(f32), params["beta1"].astype(f32)
    g2, be2 = params["gamma2"].astype(f32), params["beta2"].astype(f32)

    def resident(shape):
        # Constant index_map: the block never changes across the grid, so
        # Pallas skips the re-DMA and the weight stays VMEM-resident.
        return pl.BlockSpec(shape, lambda b, q: (0,) * len(shape))

    in_specs = [
        pl.BlockSpec((None, S, D), lambda b, q: (b, 0, 0)),   # x (full sequence)
        resident((D, D)), resident((1, D)),                   # wq, bq
        resident((D, D)), resident((1, D)),                   # wk, bk
        resident((D, D)), resident((1, D)),                   # wv, bv
        resident((D, D)), resident((1, D)),                   # wc, bc
        resident((1, D)), resident((1, D)),                   # gamma1, beta1
        resident((D, H)), resident((1, H)),                   # w1, b1
        resident((H, D)), resident((1, D)),                   # w2, b2
        resident((1, D)), resident((1, D)),                   # gamma2, beta2
    ]
    out_specs = pl.BlockSpec((None, tq, D), lambda b, q: (b, q, 0))

    scratch_shapes = [
        pltpu.VMEM((n_head, tq, d_t), cd),     # Q, head-major
        pltpu.VMEM((n_head, S, d_t), cd),      # K, head-major (reused across q tiles)
        pltpu.VMEM((n_head, S, d_t), cd),      # V, head-major (reused across q tiles)
        pltpu.VMEM((tq, D), cd),               # per-tile attention output slab
    ]

    # Explicit VMEM budget: 2x (double-buffered pipeline) for the blocked
    # inputs/outputs, plus scratch and activation headroom.
    # NOTE: for v7x (64 MiB VMEM) with large D/H, re-derive the tiling
    # (bf16 weights and/or an H-tiled FFN) instead of just raising this.
    wbytes = (4 * D * D + 2 * D * H) * cd.itemsize
    bbytes = (7 * D + H) * 4
    blk_bytes = (S * D + tq * D) * x.dtype.itemsize
    scr_bytes = (n_head * (tq + 2 * S) * d_t + tq * D) * cd.itemsize
    act_bytes = (3 * n_head * tq * S + 8 * tq * max(D, H)) * 4
    vmem_limit = int(min(100 * 2 ** 20,
                         max(16 * 2 ** 20,
                             2 * (wbytes + bbytes + blk_bytes)
                             + scr_bytes + act_bytes + (4 << 20))))

    kernel = functools.partial(encoder_layer_kernel, n_head=n_head, eps=eps,
                               tq=tq, compute_dtype=cd)
    return pl.pallas_call(
        kernel,
        out_shape=jax.ShapeDtypeStruct((B, S, D), x.dtype),
        grid=(B, n_q),
        in_specs=in_specs,
        out_specs=out_specs,
        scratch_shapes=scratch_shapes,
        compiler_params=pltpu.CompilerParams(
            # Batch axis shards across TensorCores; the query-tile axis carries
            # the K/V scratch (computed at qi == 0), so it must stay "arbitrary".
            dimension_semantics=("parallel", "arbitrary"),
            vmem_limit_bytes=vmem_limit,
        ),
    )(x, wq, bq, wk, bk, wv, bv, wc, bc,
      g1, be1, w1, fb1, w2, fb2, g2, be2)


def encoder_layer_ref(x, params, *, n_head, eps=1e-12):
    """Pure-JAX reference mirroring the PyTorch forward (eval mode)."""
    B, S, D = x.shape
    d_t = D // n_head

    def ln(t, g, b):
        m = jnp.mean(t, -1, keepdims=True)
        v = jnp.mean((t - m) ** 2, -1, keepdims=True)
        return g * ((t - m) / jnp.sqrt(v + eps)) + b

    q = x @ params["wq"] + params["bq"]
    k = x @ params["wk"] + params["bk"]
    v = x @ params["wv"] + params["bv"]
    split = lambda t: t.reshape(B, S, n_head, d_t).transpose(0, 2, 1, 3)
    q, k, v = split(q), split(k), split(v)
    score = jnp.einsum("bhqd,bhkd->bhqk", q, k) / math.sqrt(d_t)
    score = jax.nn.softmax(score, axis=-1)
    out = jnp.einsum("bhqk,bhkd->bhqd", score, v)
    out = out.transpose(0, 2, 1, 3).reshape(B, S, D)
    out = out @ params["wc"] + params["bc"]
    x1 = ln(out + x, params["gamma1"], params["beta1"])
    h1 = jax.nn.relu(x1 @ params["w1"] + params["b1"])
    y = h1 @ params["w2"] + params["b2"]
    return ln(y + x1, params["gamma2"], params["beta2"])


if __name__ == "__main__":
    B, S, D, H, n_head = 2, 16, 32, 64, 4
    key = jax.random.PRNGKey(0)
    ks = jax.random.split(key, 16)

    def lin(kw, fan_in, shape_w, shape_b):
        bound = 1.0 / math.sqrt(fan_in)
        w = jax.random.uniform(kw[0], shape_w, jnp.float32, -bound, bound)
        b = jax.random.uniform(kw[1], shape_b, jnp.float32, -bound, bound)
        return w, b

    wq, bq = lin(ks[0:2], D, (D, D), (1, D))
    wk, bk = lin(ks[2:4], D, (D, D), (1, D))
    wv, bv = lin(ks[4:6], D, (D, D), (1, D))
    wc, bc = lin(ks[6:8], D, (D, D), (1, D))
    w1, b1 = lin(ks[8:10], D, (D, H), (1, H))
    w2, b2 = lin(ks[10:12], H, (H, D), (1, D))

    params = dict(
        wq=wq, bq=bq, wk=wk, bk=bk, wv=wv, bv=bv, wc=wc, bc=bc,
        gamma1=jnp.ones((1, D), jnp.float32), beta1=jnp.zeros((1, D), jnp.float32),
        w1=w1, b1=b1, w2=w2, b2=b2,
        gamma2=jnp.ones((1, D), jnp.float32), beta2=jnp.zeros((1, D), jnp.float32),
    )

    x = jax.random.normal(ks[12], (B, S, D), jnp.float32)

    ref = encoder_layer_ref(x, params, n_head=n_head)

    # f32 path; q_tile=8 exercises the multi-tile grid + K/V scratch reuse.
    # (5e-3 tolerance: softmax uses the approximate EUP reciprocal.)
    out = jax.block_until_ready(encoder_layer(x, params, n_head=n_head, q_tile=8))
    assert out.shape == ref.shape
    assert jnp.allclose(out, ref, atol=5e-3, rtol=5e-3), "f32 kernel mismatch vs reference"

    # Single-tile path (tq == S) to check the qi==0-only branch as well.
    out_full = jax.block_until_ready(encoder_layer(x, params, n_head=n_head))
    assert jnp.allclose(out_full, ref, atol=5e-3, rtol=5e-3), "full-tile kernel mismatch"

    # bf16 MXU path (v6e/v7x fast path, f32 accumulation): looser tolerance.
    out_bf16 = jax.block_until_ready(
        encoder_layer(x, params, n_head=n_head, q_tile=8,
                      compute_dtype=jnp.bfloat16))
    assert jnp.allclose(out_bf16, ref, atol=5e-2, rtol=5e-2), "bf16 kernel mismatch vs reference"

    print("KERNEL_OK")
</pallas_src>

<mosaic_0001>
module attributes {stable_mosaic.version = 11 : i64} {
  func.func @encoder_layer_kernel(%arg0: i32, %arg1: i32, %arg2: memref<1x16x32xf32, #tpu.memory_space<vmem>>, %arg3: memref<32x32xf32, #tpu.memory_space<vmem>>, %arg4: memref<1x32xf32, #tpu.memory_space<vmem>>, %arg5: memref<32x32xf32, #tpu.memory_space<vmem>>, %arg6: memref<1x32xf32, #tpu.memory_space<vmem>>, %arg7: memref<32x32xf32, #tpu.memory_space<vmem>>, %arg8: memref<1x32xf32, #tpu.memory_space<vmem>>, %arg9: memref<32x32xf32, #tpu.memory_space<vmem>>, %arg10: memref<1x32xf32, #tpu.memory_space<vmem>>, %arg11: memref<1x32xf32, #tpu.memory_space<vmem>>, %arg12: memref<1x32xf32, #tpu.memory_space<vmem>>, %arg13: memref<32x64xf32, #tpu.memory_space<vmem>>, %arg14: memref<1x64xf32, #tpu.memory_space<vmem>>, %arg15: memref<64x32xf32, #tpu.memory_space<vmem>>, %arg16: memref<1x32xf32, #tpu.memory_space<vmem>>, %arg17: memref<1x32xf32, #tpu.memory_space<vmem>>, %arg18: memref<1x32xf32, #tpu.memory_space<vmem>>, %arg19: memref<1x8x32xf32, #tpu.memory_space<vmem>>, %arg20: memref<4x8x8xf32, #tpu.memory_space<vmem>>, %arg21: memref<4x16x8xf32, #tpu.memory_space<vmem>>, %arg22: memref<4x16x8xf32, #tpu.memory_space<vmem>>, %arg23: memref<8x32xf32, #tpu.memory_space<vmem>>) attributes {dimension_semantics = [#tpu.dimension_semantics<parallel>, #tpu.dimension_semantics<arbitrary>], iteration_bounds = array<i64: 2, 2>, scalar_prefetch = 0 : i64, scratch_operands = 4 : i64, tpu.core_type = #tpu.core_type<tc>, window_params = [{transform_indices = @transform_0, window_bounds = array<i64: 1, 16, 32>}, {pipeline_mode = #tpu.pipeline_mode<synchronous>, transform_indices = @transform_1, window_bounds = array<i64: 32, 32>}, {pipeline_mode = #tpu.pipeline_mode<synchronous>, transform_indices = @transform_2, window_bounds = array<i64: 1, 32>}, {pipeline_mode = #tpu.pipeline_mode<synchronous>, transform_indices = @transform_3, window_bounds = array<i64: 32, 32>}, {pipeline_mode = #tpu.pipeline_mode<synchronous>, transform_indices = @transform_4, window_bounds = array<i64: 1, 32>}, {pipeline_mode = #tpu.pipeline_mode<synchronous>, transform_indices = @transform_5, window_bounds = array<i64: 32, 32>}, {pipeline_mode = #tpu.pipeline_mode<synchronous>, transform_indices = @transform_6, window_bounds = array<i64: 1, 32>}, {pipeline_mode = #tpu.pipeline_mode<synchronous>, transform_indices = @transform_7, window_bounds = array<i64: 32, 32>}, {pipeline_mode = #tpu.pipeline_mode<synchronous>, transform_indices = @transform_8, window_bounds = array<i64: 1, 32>}, {pipeline_mode = #tpu.pipeline_mode<synchronous>, transform_indices = @transform_9, window_bounds = array<i64: 1, 32>}, {pipeline_mode = #tpu.pipeline_mode<synchronous>, transform_indices = @transform_10, window_bounds = array<i64: 1, 32>}, {pipeline_mode = #tpu.pipeline_mode<synchronous>, transform_indices = @transform_11, window_bounds = array<i64: 32, 64>}, {pipeline_mode = #tpu.pipeline_mode<synchronous>, transform_indices = @transform_12, window_bounds = array<i64: 1, 64>}, {pipeline_mode = #tpu.pipeline_mode<synchronous>, transform_indices = @transform_13, window_bounds = array<i64: 64, 32>}, {pipeline_mode = #tpu.pipeline_mode<synchronous>, transform_indices = @transform_14, window_bounds = array<i64: 1, 32>}, {pipeline_mode = #tpu.pipeline_mode<synchronous>, transform_indices = @transform_15, window_bounds = array<i64: 1, 32>}, {pipeline_mode = #tpu.pipeline_mode<synchronous>, transform_indices = @transform_16, window_bounds = array<i64: 1, 32>}, {transform_indices = @transform_17, window_bounds = array<i64: 1, 8, 32>}]} {
    %c0 = arith.constant 0 : index
    %c0_0 = arith.constant 0 : index
    %0 = vector.load %arg4[%c0, %c0_0] : memref<1x32xf32, #tpu.memory_space<vmem>>, vector<1x32xf32>
    %c0_1 = arith.constant 0 : index
    %c0_2 = arith.constant 0 : index
    %1 = vector.load %arg10[%c0_1, %c0_2] : memref<1x32xf32, #tpu.memory_space<vmem>>, vector<1x32xf32>
    %c0_3 = arith.constant 0 : index
    %c0_4 = arith.constant 0 : index
    %2 = vector.load %arg11[%c0_3, %c0_4] : memref<1x32xf32, #tpu.memory_space<vmem>>, vector<1x32xf32>
    %c0_5 = arith.constant 0 : index
    %c0_6 = arith.constant 0 : index
    %3 = vector.load %arg12[%c0_5, %c0_6] : memref<1x32xf32, #tpu.memory_space<vmem>>, vector<1x32xf32>
    %c0_7 = arith.constant 0 : index
    %c0_8 = arith.constant 0 : index
    %4 = vector.load %arg17[%c0_7, %c0_8] : memref<1x32xf32, #tpu.memory_space<vmem>>, vector<1x32xf32>
    %c0_9 = arith.constant 0 : index
    %c0_10 = arith.constant 0 : index
    %5 = vector.load %arg18[%c0_9, %c0_10] : memref<1x32xf32, #tpu.memory_space<vmem>>, vector<1x32xf32>
    %c0_11 = arith.constant 0 : index
    %c0_12 = arith.constant 0 : index
    %6 = vector.load %arg14[%c0_11, %c0_12] : memref<1x64xf32, #tpu.memory_space<vmem>>, vector<1x64xf32>
    %c0_13 = arith.constant 0 : index
    %c0_14 = arith.constant 0 : index
    %7 = vector.load %arg16[%c0_13, %c0_14] : memref<1x32xf32, #tpu.memory_space<vmem>>, vector<1x32xf32>
    %c0_i32 = arith.constant 0 : i32
    %8 = arith.cmpi eq, %arg1, %c0_i32 : i32
    %9 = arith.extui %8 : i1 to i32
    %c0_i32_15 = arith.constant 0 : i32
    %10 = arith.cmpi ne, %9, %c0_i32_15 : i32
    scf.if %10 {
      %c0_73 = arith.constant 0 : index
      %c0_74 = arith.constant 0 : index
      %c0_75 = arith.constant 0 : index
      %125 = vector.load %arg2[%c0_73, %c0_74, %c0_75] : memref<1x16x32xf32, #tpu.memory_space<vmem>>, vector<1x16x32xf32>
      %126 = vector.shape_cast %125 : vector<1x16x32xf32> to vector<16x32xf32>
      %c0_76 = arith.constant 0 : index
      %c0_77 = arith.constant 0 : index
      %127 = vector.load %arg5[%c0_76, %c0_77] : memref<32x32xf32, #tpu.memory_space<vmem>>, vector<32x32xf32>
      %cst_78 = arith.constant dense<0.000000e+00> : vector<16x32xf32>
      %128 = tpu.matmul %126, %127, %cst_78 {dimension_numbers = #tpu.dot_dimension_numbers<[1], [0], [0], [1], [0, 0, 1, 1], [], []>} : vector<16x32xf32>, vector<32x32xf32>, vector<16x32xf32> -> vector<16x32xf32>
      %c0_79 = arith.constant 0 : index
      %c0_80 = arith.constant 0 : index
      %129 = vector.load %arg6[%c0_79, %c0_80] : memref<1x32xf32, #tpu.memory_space<vmem>>, vector<1x32xf32>
      %130 = vector.broadcast %129 : vector<1x32xf32> to vector<16x32xf32>
      %131 = arith.addf %128, %130 : vector<16x32xf32>
      %c0_81 = arith.constant 0 : index
      %c0_82 = arith.constant 0 : index
      %132 = vector.load %arg7[%c0_81, %c0_82] : memref<32x32xf32, #tpu.memory_space<vmem>>, vector<32x32xf32>
      %cst_83 = arith.constant dense<0.000000e+00> : vector<16x32xf32>
      %133 = tpu.matmul %126, %132, %cst_83 {dimension_numbers = #tpu.dot_dimension_numbers<[1], [0], [0], [1], [0, 0, 1, 1], [], []>} : vector<16x32xf32>, vector<32x32xf32>, vector<16x32xf32> -> vector<16x32xf32>
      %c0_84 = arith.constant 0 : index
      %c0_85 = arith.constant 0 : index
      %134 = vector.load %arg8[%c0_84, %c0_85] : memref<1x32xf32, #tpu.memory_space<vmem>>, vector<1x32xf32>
      %135 = vector.broadcast %134 : vector<1x32xf32> to vector<16x32xf32>
      %136 = arith.addf %133, %135 : vector<16x32xf32>
      %137 = vector.extract_strided_slice %131 {offsets = [0, 0], sizes = [16, 8], strides = [1, 1]} : vector<16x32xf32> to vector<16x8xf32>
      %c0_86 = arith.constant 0 : index
      %c0_87 = arith.constant 0 : index
      %c0_88 = arith.constant 0 : index
      %138 = vector.load %arg21[%c0_86, %c0_87, %c0_88] : memref<4x16x8xf32, #tpu.memory_space<vmem>>, vector<1x16x8xf32>
      %139 = vector.shape_cast %138 : vector<1x16x8xf32> to vector<16x8xf32>
      %140 = vector.shape_cast %137 : vector<16x8xf32> to vector<1x16x8xf32>
      tpu.vector_store %arg21[%c0_86, %c0_87, %c0_88], %140 {strides = array<i32>} : memref<4x16x8xf32, #tpu.memory_space<vmem>>, vector<1x16x8xf32>,
      %141 = vector.extract_strided_slice %136 {offsets = [0, 0], sizes = [16, 8], strides = [1, 1]} : vector<16x32xf32> to vector<16x8xf32>
      %c0_89 = arith.constant 0 : index
      %c0_90 = arith.constant 0 : index
      %c0_91 = arith.constant 0 : index
      %142 = vector.load %arg22[%c0_89, %c0_90, %c0_91] : memref<4x16x8xf32, #tpu.memory_space<vmem>>, vector<1x16x8xf32>
      %143 = vector.shape_cast %142 : vector<1x16x8xf32> to vector<16x8xf32>
      %144 = vector.shape_cast %141 : vector<16x8xf32> to vector<1x16x8xf32>
      tpu.vector_store %arg22[%c0_89, %c0_90, %c0_91], %144 {strides = array<i32>} : memref<4x16x8xf32, #tpu.memory_space<vmem>>, vector<1x16x8xf32>,
      %145 = vector.extract_strided_slice %131 {offsets = [0, 8], sizes = [16, 8], strides = [1, 1]} : vector<16x32xf32> to vector<16x8xf32>
      %c1_92 = arith.constant 1 : index
      %c0_93 = arith.constant 0 : index
      %c0_94 = arith.constant 0 : index
      %146 = vector.load %arg21[%c1_92, %c0_93, %c0_94] : memref<4x16x8xf32, #tpu.memory_space<vmem>>, vector<1x16x8xf32>
      %147 = vector.shape_cast %146 : vector<1x16x8xf32> to vector<16x8xf32>
      %148 = vector.shape_cast %145 : vector<16x8xf32> to vector<1x16x8xf32>
      tpu.vector_store %arg21[%c1_92, %c0_93, %c0_94], %148 {strides = array<i32>} : memref<4x16x8xf32, #tpu.memory_space<vmem>>, vector<1x16x8xf32>,
      %149 = vector.extract_strided_slice %136 {offsets = [0, 8], sizes = [16, 8], strides = [1, 1]} : vector<16x32xf32> to vector<16x8xf32>
      %c1_95 = arith.constant 1 : index
      %c0_96 = arith.constant 0 : index
      %c0_97 = arith.constant 0 : index
      %150 = vector.load %arg22[%c1_95, %c0_96, %c0_97] : memref<4x16x8xf32, #tpu.memory_space<vmem>>, vector<1x16x8xf32>
      %151 = vector.shape_cast %150 : vector<1x16x8xf32> to vector<16x8xf32>
      %152 = vector.shape_cast %149 : vector<16x8xf32> to vector<1x16x8xf32>
      tpu.vector_store %arg22[%c1_95, %c0_96, %c0_97], %152 {strides = array<i32>} : memref<4x16x8xf32, #tpu.memory_space<vmem>>, vector<1x16x8xf32>,
      %153 = vector.extract_strided_slice %131 {offsets = [0, 16], sizes = [16, 8], strides = [1, 1]} : vector<16x32xf32> to vector<16x8xf32>
      %c2_98 = arith.constant 2 : index
      %c0_99 = arith.constant 0 : index
      %c0_100 = arith.constant 0 : index
      %154 = vector.load %arg21[%c2_98, %c0_99, %c0_100] : memref<4x16x8xf32, #tpu.memory_space<vmem>>, vector<1x16x8xf32>
      %155 = vector.shape_cast %154 : vector<1x16x8xf32> to vector<16x8xf32>
      %156 = vector.shape_cast %153 : vector<16x8xf32> to vector<1x16x8xf32>
      tpu.vector_store %arg21[%c2_98, %c0_99, %c0_100], %156 {strides = array<i32>} : memref<4x16x8xf32, #tpu.memory_space<vmem>>, vector<1x16x8xf32>,
      %157 = vector.extract_strided_slice %136 {offsets = [0, 16], sizes = [16, 8], strides = [1, 1]} : vector<16x32xf32> to vector<16x8xf32>
      %c2_101 = arith.constant 2 : index
      %c0_102 = arith.constant 0 : index
      %c0_103 = arith.constant 0 : index
      %158 = vector.load %arg22[%c2_101, %c0_102, %c0_103] : memref<4x16x8xf32, #tpu.memory_space<vmem>>, vector<1x16x8xf32>
      %159 = vector.shape_cast %158 : vector<1x16x8xf32> to vector<16x8xf32>
      %160 = vector.shape_cast %157 : vector<16x8xf32> to vector<1x16x8xf32>
      tpu.vector_store %arg22[%c2_101, %c0_102, %c0_103], %160 {strides = array<i32>} : memref<4x16x8xf32, #tpu.memory_space<vmem>>, vector<1x16x8xf32>,
      %161 = vector.extract_strided_slice %131 {offsets = [0, 24], sizes = [16, 8], strides = [1, 1]} : vector<16x32xf32> to vector<16x8xf32>
      %c3_104 = arith.constant 3 : index
      %c0_105 = arith.constant 0 : index
      %c0_106 = arith.constant 0 : index
      %162 = vector.load %arg21[%c3_104, %c0_105, %c0_106] : memref<4x16x8xf32, #tpu.memory_space<vmem>>, vector<1x16x8xf32>
      %163 = vector.shape_cast %162 : vector<1x16x8xf32> to vector<16x8xf32>
      %164 = vector.shape_cast %161 : vector<16x8xf32> to vector<1x16x8xf32>
      tpu.vector_store %arg21[%c3_104, %c0_105, %c0_106], %164 {strides = array<i32>} : memref<4x16x8xf32, #tpu.memory_space<vmem>>, vector<1x16x8xf32>,
      %165 = vector.extract_strided_slice %136 {offsets = [0, 24], sizes = [16, 8], strides = [1, 1]} : vector<16x32xf32> to vector<16x8xf32>
      %c3_107 = arith.constant 3 : index
      %c0_108 = arith.constant 0 : index
      %c0_109 = arith.constant 0 : index
      %166 = vector.load %arg22[%c3_107, %c0_108, %c0_109] : memref<4x16x8xf32, #tpu.memory_space<vmem>>, vector<1x16x8xf32>
      %167 = vector.shape_cast %166 : vector<1x16x8xf32> to vector<16x8xf32>
      %168 = vector.shape_cast %165 : vector<16x8xf32> to vector<1x16x8xf32>
      tpu.vector_store %arg22[%c3_107, %c0_108, %c0_109], %168 {strides = array<i32>} : memref<4x16x8xf32, #tpu.memory_space<vmem>>, vector<1x16x8xf32>,
    } else {
    }
    %c8_i32 = arith.constant 8 : i32
    %11 = arith.muli %arg1, %c8_i32 : i32
    %12 = tpu.assume_multiple %11, 8 : i32
    %c0_16 = arith.constant 0 : index
    %13 = arith.index_cast %12 : i32 to index
    %c0_17 = arith.constant 0 : index
    %14 = vector.load %arg2[%c0_16, %13, %c0_17] : memref<1x16x32xf32, #tpu.memory_space<vmem>>, vector<1x8x32xf32>
    %15 = vector.shape_cast %14 : vector<1x8x32xf32> to vector<8x32xf32>
    %c0_18 = arith.constant 0 : index
    %c0_19 = arith.constant 0 : index
    %16 = vector.load %arg3[%c0_18, %c0_19] : memref<32x32xf32, #tpu.memory_space<vmem>>, vector<32x32xf32>
    %cst = arith.constant dense<0.000000e+00> : vector<8x32xf32>
    %17 = tpu.matmul %15, %16, %cst {dimension_numbers = #tpu.dot_dimension_numbers<[1], [0], [0], [1], [0, 0, 1, 1], [], []>} : vector<8x32xf32>, vector<32x32xf32>, vector<8x32xf32> -> vector<8x32xf32>
    %18 = vector.broadcast %0 : vector<1x32xf32> to vector<8x32xf32>
    %19 = arith.addf %17, %18 : vector<8x32xf32>
    %cst_20 = arith.constant 0.353553385 : f32
    %20 = vector.broadcast %cst_20 : f32 to vector<8x32xf32>
    %21 = arith.mulf %19, %20 : vector<8x32xf32>
    %22 = vector.extract_strided_slice %21 {offsets = [0, 0], sizes = [8, 8], strides = [1, 1]} : vector<8x32xf32> to vector<8x8xf32>
    %c0_21 = arith.constant 0 : index
    %c0_22 = arith.constant 0 : index
    %c0_23 = arith.constant 0 : index
    %23 = vector.load %arg20[%c0_21, %c0_22, %c0_23] : memref<4x8x8xf32, #tpu.memory_space<vmem>>, vector<1x8x8xf32>
    %24 = vector.shape_cast %23 : vector<1x8x8xf32> to vector<8x8xf32>
    %25 = vector.shape_cast %22 : vector<8x8xf32> to vector<1x8x8xf32>
    tpu.vector_store %arg20[%c0_21, %c0_22, %c0_23], %25 {strides = array<i32>} : memref<4x8x8xf32, #tpu.memory_space<vmem>>, vector<1x8x8xf32>,
    %26 = vector.extract_strided_slice %21 {offsets = [0, 8], sizes = [8, 8], strides = [1, 1]} : vector<8x32xf32> to vector<8x8xf32>
    %c1 = arith.constant 1 : index
    %c0_24 = arith.constant 0 : index
    %c0_25 = arith.constant 0 : index
    %27 = vector.load %arg20[%c1, %c0_24, %c0_25] : memref<4x8x8xf32, #tpu.memory_space<vmem>>, vector<1x8x8xf32>
    %28 = vector.shape_cast %27 : vector<1x8x8xf32> to vector<8x8xf32>
    %29 = vector.shape_cast %26 : vector<8x8xf32> to vector<1x8x8xf32>
    tpu.vector_store %arg20[%c1, %c0_24, %c0_25], %29 {strides = array<i32>} : memref<4x8x8xf32, #tpu.memory_space<vmem>>, vector<1x8x8xf32>,
    %30 = vector.extract_strided_slice %21 {offsets = [0, 16], sizes = [8, 8], strides = [1, 1]} : vector<8x32xf32> to vector<8x8xf32>
    %c2 = arith.constant 2 : index
    %c0_26 = arith.constant 0 : index
    %c0_27 = arith.constant 0 : index
    %31 = vector.load %arg20[%c2, %c0_26, %c0_27] : memref<4x8x8xf32, #tpu.memory_space<vmem>>, vector<1x8x8xf32>
    %32 = vector.shape_cast %31 : vector<1x8x8xf32> to vector<8x8xf32>
    %33 = vector.shape_cast %30 : vector<8x8xf32> to vector<1x8x8xf32>
    tpu.vector_store %arg20[%c2, %c0_26, %c0_27], %33 {strides = array<i32>} : memref<4x8x8xf32, #tpu.memory_space<vmem>>, vector<1x8x8xf32>,
    %34 = vector.extract_strided_slice %21 {offsets = [0, 24], sizes = [8, 8], strides = [1, 1]} : vector<8x32xf32> to vector<8x8xf32>
    %c3 = arith.constant 3 : index
    %c0_28 = arith.constant 0 : index
    %c0_29 = arith.constant 0 : index
    %35 = vector.load %arg20[%c3, %c0_28, %c0_29] : memref<4x8x8xf32, #tpu.memory_space<vmem>>, vector<1x8x8xf32>
    %36 = vector.shape_cast %35 : vector<1x8x8xf32> to vector<8x8xf32>
    %37 = vector.shape_cast %34 : vector<8x8xf32> to vector<1x8x8xf32>
    tpu.vector_store %arg20[%c3, %c0_28, %c0_29], %37 {strides = array<i32>} : memref<4x8x8xf32, #tpu.memory_space<vmem>>, vector<1x8x8xf32>,
    %c0_30 = arith.constant 0 : index
    %c0_31 = arith.constant 0 : index
    %c0_32 = arith.constant 0 : index
    %38 = vector.load %arg20[%c0_30, %c0_31, %c0_32] : memref<4x8x8xf32, #tpu.memory_space<vmem>>, vector<4x8x8xf32>
    %c0_33 = arith.constant 0 : index
    %c0_34 = arith.constant 0 : index
    %c0_35 = arith.constant 0 : index
    %39 = vector.load %arg21[%c0_33, %c0_34, %c0_35] : memref<4x16x8xf32, #tpu.memory_space<vmem>>, vector<4x16x8xf32>
    "tpu.trace_start"() <{level = 10 : i32, message = "hqd,hkd->hqk"}> : () -> ()
    %cst_36 = arith.constant dense<0.000000e+00> : vector<4x8x16xf32>
    %40 = tpu.matmul %38, %39, %cst_36 {dimension_numbers = #tpu.dot_dimension_numbers<[2], [2], [1], [1], [0, 0, 0, 1, 1, 1], [0], [0]>} : vector<4x8x8xf32>, vector<4x16x8xf32>, vector<4x8x16xf32> -> vector<4x8x16xf32>
    "tpu.trace_stop"() : () -> ()
    %cst_37 = arith.constant dense<0xFF800000> : vector<4x8xf32>
    %41 = vector.multi_reduction <maximumf>, %40, %cst_37 [2] : vector<4x8x16xf32> to vector<4x8xf32>
    %42 = vector.shape_cast %41 : vector<4x8xf32> to vector<4x8x1xf32>
    %43 = vector.broadcast %42 : vector<4x8x1xf32> to vector<4x8x16xf32>
    %44 = arith.subf %40, %43 : vector<4x8x16xf32>
    %45 = math.exp %44 : vector<4x8x16xf32>
    %cst_38 = arith.constant dense<0.000000e+00> : vector<4x8xf32>
    %46 = vector.multi_reduction <add>, %45, %cst_38 [2] : vector<4x8x16xf32> to vector<4x8xf32>
    %47 = vector.shape_cast %46 : vector<4x8xf32> to vector<4x8x1xf32>
    %48 = tpu.reciprocal %47 {approx = true} : vector<4x8x1xf32> -> vector<4x8x1xf32>
    %49 = vector.broadcast %48 : vector<4x8x1xf32> to vector<4x8x16xf32>
    %50 = arith.mulf %45, %49 : vector<4x8x16xf32>
    %c0_39 = arith.constant 0 : index
    %c0_40 = arith.constant 0 : index
    %c0_41 = arith.constant 0 : index
    %51 = vector.load %arg22[%c0_39, %c0_40, %c0_41] : memref<4x16x8xf32, #tpu.memory_space<vmem>>, vector<4x16x8xf32>
    "tpu.trace_start"() <{level = 10 : i32, message = "hqk,hkd->hqd"}> : () -> ()
    %cst_42 = arith.constant dense<0.000000e+00> : vector<4x8x8xf32>
    %52 = tpu.matmul %50, %51, %cst_42 {dimension_numbers = #tpu.dot_dimension_numbers<[2], [1], [1], [2], [0, 0, 0, 1, 1, 2], [0], [0]>} : vector<4x8x16xf32>, vector<4x16x8xf32>, vector<4x8x8xf32> -> vector<4x8x8xf32>
    "tpu.trace_stop"() : () -> ()
    %53 = vector.extract_strided_slice %52 {offsets = [0, 0, 0], sizes = [1, 8, 8], strides = [1, 1, 1]} : vector<4x8x8xf32> to vector<1x8x8xf32>
    %54 = vector.shape_cast %53 : vector<1x8x8xf32> to vector<8x8xf32>
    %c0_43 = arith.constant 0 : index
    %c0_44 = arith.constant 0 : index
    %55 = vector.load %arg23[%c0_43, %c0_44] : memref<8x32xf32, #tpu.memory_space<vmem>>, vector<8x8xf32>
    tpu.vector_store %arg23[%c0_43, %c0_44], %54 {strides = array<i32>} : memref<8x32xf32, #tpu.memory_space<vmem>>, vector<8x8xf32>,
    %56 = vector.extract_strided_slice %52 {offsets = [1, 0, 0], sizes = [1, 8, 8], strides = [1, 1, 1]} : vector<4x8x8xf32> to vector<1x8x8xf32>
    %57 = vector.shape_cast %56 : vector<1x8x8xf32> to vector<8x8xf32>
    %c0_45 = arith.constant 0 : index
    %c8 = arith.constant 8 : index
    %58 = vector.load %arg23[%c0_45, %c8] : memref<8x32xf32, #tpu.memory_space<vmem>>, vector<8x8xf32>
    tpu.vector_store %arg23[%c0_45, %c8], %57 {strides = array<i32>} : memref<8x32xf32, #tpu.memory_space<vmem>>, vector<8x8xf32>,
    %59 = vector.extract_strided_slice %52 {offsets = [2, 0, 0], sizes = [1, 8, 8], strides = [1, 1, 1]} : vector<4x8x8xf32> to vector<1x8x8xf32>
    %60 = vector.shape_cast %59 : vector<1x8x8xf32> to vector<8x8xf32>
    %c0_46 = arith.constant 0 : index
    %c16 = arith.constant 16 : index
    %61 = vector.load %arg23[%c0_46, %c16] : memref<8x32xf32, #tpu.memory_space<vmem>>, vector<8x8xf32>
    tpu.vector_store %arg23[%c0_46, %c16], %60 {strides = array<i32>} : memref<8x32xf32, #tpu.memory_space<vmem>>, vector<8x8xf32>,
    %62 = vector.extract_strided_slice %52 {offsets = [3, 0, 0], sizes = [1, 8, 8], strides = [1, 1, 1]} : vector<4x8x8xf32> to vector<1x8x8xf32>
    %63 = vector.shape_cast %62 : vector<1x8x8xf32> to vector<8x8xf32>
    %c0_47 = arith.constant 0 : index
    %c24 = arith.constant 24 : index
    %64 = vector.load %arg23[%c0_47, %c24] : memref<8x32xf32, #tpu.memory_space<vmem>>, vector<8x8xf32>
    tpu.vector_store %arg23[%c0_47, %c24], %63 {strides = array<i32>} : memref<8x32xf32, #tpu.memory_space<vmem>>, vector<8x8xf32>,
    %c0_48 = arith.constant 0 : index
    %c0_49 = arith.constant 0 : index
    %65 = vector.load %arg23[%c0_48, %c0_49] : memref<8x32xf32, #tpu.memory_space<vmem>>, vector<8x32xf32>
    %c0_50 = arith.constant 0 : index
    %c0_51 = arith.constant 0 : index
    %66 = vector.load %arg9[%c0_50, %c0_51] : memref<32x32xf32, #tpu.memory_space<vmem>>, vector<32x32xf32>
    %cst_52 = arith.constant dense<0.000000e+00> : vector<8x32xf32>
    %67 = tpu.matmul %65, %66, %cst_52 {dimension_numbers = #tpu.dot_dimension_numbers<[1], [0], [0], [1], [0, 0, 1, 1], [], []>} : vector<8x32xf32>, vector<32x32xf32>, vector<8x32xf32> -> vector<8x32xf32>
    %68 = vector.broadcast %1 : vector<1x32xf32> to vector<8x32xf32>
    %69 = arith.addf %67, %68 : vector<8x32xf32>
    %70 = arith.addf %69, %15 : vector<8x32xf32>
    %cst_53 = arith.constant dense<0.000000e+00> : vector<8xf32>
    %71 = vector.multi_reduction <add>, %70, %cst_53 [1] : vector<8x32xf32> to vector<8xf32>
    %72 = vector.shape_cast %71 : vector<8xf32> to vector<8x1xf32>
    %cst_54 = arith.constant 3.200000e+01 : f32
    %73 = vector.broadcast %cst_54 : f32 to vector<8x1xf32>
    %74 = arith.divf %72, %73 : vector<8x1xf32>
    %75 = vector.broadcast %74 : vector<8x1xf32> to vector<8x32xf32>
    %76 = arith.subf %70, %75 : vector<8x32xf32>
    %77 = arith.mulf %76, %76 : vector<8x32xf32>
    %cst_55 = arith.constant dense<0.000000e+00> : vector<8xf32>
    %78 = vector.multi_reduction <add>, %77, %cst_55 [1] : vector<8x32xf32> to vector<8xf32>
    %79 = vector.shape_cast %78 : vector<8xf32> to vector<8x1xf32>
    %cst_56 = arith.constant 3.200000e+01 : f32
    %80 = vector.broadcast %cst_56 : f32 to vector<8x1xf32>
    %81 = arith.divf %79, %80 : vector<8x1xf32>
    %cst_57 = arith.constant 9.99999996E-13 : f32
    %82 = vector.broadcast %cst_57 : f32 to vector<8x1xf32>
    %83 = arith.addf %81, %82 : vector<8x1xf32>
    %84 = math.rsqrt %83 : vector<8x1xf32>
    %85 = vector.broadcast %84 : vector<8x1xf32> to vector<8x32xf32>
    %86 = arith.mulf %76, %85 : vector<8x32xf32>
    %87 = vector.broadcast %2 : vector<1x32xf32> to vector<8x32xf32>
    %88 = arith.mulf %87, %86 : vector<8x32xf32>
    %89 = vector.broadcast %3 : vector<1x32xf32> to vector<8x32xf32>
    %90 = arith.addf %88, %89 : vector<8x32xf32>
    %c0_58 = arith.constant 0 : index
    %c0_59 = arith.constant 0 : index
    %91 = vector.load %arg13[%c0_58, %c0_59] : memref<32x64xf32, #tpu.memory_space<vmem>>, vector<32x64xf32>
    %cst_60 = arith.constant dense<0.000000e+00> : vector<8x64xf32>
    %92 = tpu.matmul %90, %91, %cst_60 {dimension_numbers = #tpu.dot_dimension_numbers<[1], [0], [0], [1], [0, 0, 1, 1], [], []>} : vector<8x32xf32>, vector<32x64xf32>, vector<8x64xf32> -> vector<8x64xf32>
    %93 = vector.broadcast %6 : vector<1x64xf32> to vector<8x64xf32>
    %94 = arith.addf %92, %93 : vector<8x64xf32>
    %cst_61 = arith.constant 0.000000e+00 : f32
    %95 = vector.broadcast %cst_61 : f32 to vector<8x64xf32>
    %96 = arith.maximumf %94, %95 : vector<8x64xf32>
    %c0_62 = arith.constant 0 : index
    %c0_63 = arith.constant 0 : index
    %97 = vector.load %arg15[%c0_62, %c0_63] : memref<64x32xf32, #tpu.memory_space<vmem>>, vector<64x32xf32>
    %cst_64 = arith.constant dense<0.000000e+00> : vector<8x32xf32>
    %98 = tpu.matmul %96, %97, %cst_64 {dimension_numbers = #tpu.dot_dimension_numbers<[1], [0], [0], [1], [0, 0, 1, 1], [], []>} : vector<8x64xf32>, vector<64x32xf32>, vector<8x32xf32> -> vector<8x32xf32>
    %99 = vector.broadcast %7 : vector<1x32xf32> to vector<8x32xf32>
    %100 = arith.addf %98, %99 : vector<8x32xf32>
    %101 = arith.addf %100, %90 : vector<8x32xf32>
    %cst_65 = arith.constant dense<0.000000e+00> : vector<8xf32>
    %102 = vector.multi_reduction <add>, %101, %cst_65 [1] : vector<8x32xf32> to vector<8xf32>
    %103 = vector.shape_cast %102 : vector<8xf32> to vector<8x1xf32>
    %cst_66 = arith.constant 3.200000e+01 : f32
    %104 = vector.broadcast %cst_66 : f32 to vector<8x1xf32>
    %105 = arith.divf %103, %104 : vector<8x1xf32>
    %106 = vector.broadcast %105 : vector<8x1xf32> to vector<8x32xf32>
    %107 = arith.subf %101, %106 : vector<8x32xf32>
    %108 = arith.mulf %107, %107 : vector<8x32xf32>
    %cst_67 = arith.constant dense<0.000000e+00> : vector<8xf32>
    %109 = vector.multi_reduction <add>, %108, %cst_67 [1] : vector<8x32xf32> to vector<8xf32>
    %110 = vector.shape_cast %109 : vector<8xf32> to vector<8x1xf32>
    %cst_68 = arith.constant 3.200000e+01 : f32
    %111 = vector.broadcast %cst_68 : f32 to vector<8x1xf32>
    %112 = arith.divf %110, %111 : vector<8x1xf32>
    %cst_69 = arith.constant 9.99999996E-13 : f32
    %113 = vector.broadcast %cst_69 : f32 to vector<8x1xf32>
    %114 = arith.addf %112, %113 : vector<8x1xf32>
    %115 = math.rsqrt %114 : vector<8x1xf32>
    %116 = vector.broadcast %115 : vector<8x1xf32> to vector<8x32xf32>
    %117 = arith.mulf %107, %116 : vector<8x32xf32>
    %118 = vector.broadcast %4 : vector<1x32xf32> to vector<8x32xf32>
    %119 = arith.mulf %118, %117 : vector<8x32xf32>
    %120 = vector.broadcast %5 : vector<1x32xf32> to vector<8x32xf32>
    %121 = arith.addf %119, %120 : vector<8x32xf32>
    %c0_70 = arith.constant 0 : index
    %c0_71 = arith.constant 0 : index
    %c0_72 = arith.constant 0 : index
    %122 = vector.load %arg19[%c0_70, %c0_71, %c0_72] : memref<1x8x32xf32, #tpu.memory_space<vmem>>, vector<1x8x32xf32>
    %123 = vector.shape_cast %122 : vector<1x8x32xf32> to vector<8x32xf32>
    %124 = vector.shape_cast %121 : vector<8x32xf32> to vector<1x8x32xf32>
    tpu.vector_store %arg19[%c0_70, %c0_71, %c0_72], %124 {strides = array<i32>} : memref<1x8x32xf32, #tpu.memory_space<vmem>>, vector<1x8x32xf32>,
    return
  }
  func.func @transform_0(%arg0: i32, %arg1: i32) -> (i32, i32, i32) {
    %c0_i32 = arith.constant 0 : i32
    %c0_i32_0 = arith.constant 0 : i32
    %c0_i32_1 = arith.constant 0 : i32
    return %arg0, %c0_i32, %c0_i32_0 : i32, i32, i32
  }
  func.func @transform_1(%arg0: i32, %arg1: i32) -> (i32, i32) {
    %c0_i32 = arith.constant 0 : i32
    %c0_i32_0 = arith.constant 0 : i32
    %c0_i32_1 = arith.constant 0 : i32
    return %c0_i32, %c0_i32_0 : i32, i32
  }
  func.func @transform_2(%arg0: i32, %arg1: i32) -> (i32, i32) {
    %c0_i32 = arith.constant 0 : i32
    %c0_i32_0 = arith.constant 0 : i32
    %c0_i32_1 = arith.constant 0 : i32
    return %c0_i32, %c0_i32_0 : i32, i32
  }
  func.func @transform_3(%arg0: i32, %arg1: i32) -> (i32, i32) {
    %c0_i32 = arith.constant 0 : i32
    %c0_i32_0 = arith.constant 0 : i32
    %c0_i32_1 = arith.constant 0 : i32
    return %c0_i32, %c0_i32_0 : i32, i32
  }
  func.func @transform_4(%arg0: i32, %arg1: i32) -> (i32, i32) {
    %c0_i32 = arith.constant 0 : i32
    %c0_i32_0 = arith.constant 0 : i32
    %c0_i32_1 = arith.constant 0 : i32
    return %c0_i32, %c0_i32_0 : i32, i32
  }
  func.func @transform_5(%arg0: i32, %arg1: i32) -> (i32, i32) {
    %c0_i32 = arith.constant 0 : i32
    %c0_i32_0 = arith.constant 0 : i32
    %c0_i32_1 = arith.constant 0 : i32
    return %c0_i32, %c0_i32_0 : i32, i32
  }
  func.func @transform_6(%arg0: i32, %arg1: i32) -> (i32, i32) {
    %c0_i32 = arith.constant 0 : i32
    %c0_i32_0 = arith.constant 0 : i32
    %c0_i32_1 = arith.constant 0 : i32
    return %c0_i32, %c0_i32_0 : i32, i32
  }
  func.func @transform_7(%arg0: i32, %arg1: i32) -> (i32, i32) {
    %c0_i32 = arith.constant 0 : i32
    %c0_i32_0 = arith.constant 0 : i32
    %c0_i32_1 = arith.constant 0 : i32
    return %c0_i32, %c0_i32_0 : i32, i32
  }
  func.func @transform_8(%arg0: i32, %arg1: i32) -> (i32, i32) {
    %c0_i32 = arith.constant 0 : i32
    %c0_i32_0 = arith.constant 0 : i32
    %c0_i32_1 = arith.constant 0 : i32
    return %c0_i32, %c0_i32_0 : i32, i32
  }
  func.func @transform_9(%arg0: i32, %arg1: i32) -> (i32, i32) {
    %c0_i32 = arith.constant 0 : i32
    %c0_i32_0 = arith.constant 0 : i32
    %c0_i32_1 = arith.constant 0 : i32
    return %c0_i32, %c0_i32_0 : i32, i32
  }
  func.func @transform_10(%arg0: i32, %arg1: i32) -> (i32, i32) {
    %c0_i32 = arith.constant 0 : i32
    %c0_i32_0 = arith.constant 0 : i32
    %c0_i32_1 = arith.constant 0 : i32
    return %c0_i32, %c0_i32_0 : i32, i32
  }
  func.func @transform_11(%arg0: i32, %arg1: i32) -> (i32, i32) {
    %c0_i32 = arith.constant 0 : i32
    %c0_i32_0 = arith.constant 0 : i32
    %c0_i32_1 = arith.constant 0 : i32
    return %c0_i32, %c0_i32_0 : i32, i32
  }
  func.func @transform_12(%arg0: i32, %arg1: i32) -> (i32, i32) {
    %c0_i32 = arith.constant 0 : i32
    %c0_i32_0 = arith.constant 0 : i32
    %c0_i32_1 = arith.constant 0 : i32
    return %c0_i32, %c0_i32_0 : i32, i32
  }
  func.func @transform_13(%arg0: i32, %arg1: i32) -> (i32, i32) {
    %c0_i32 = arith.constant 0 : i32
    %c0_i32_0 = arith.constant 0 : i32
    %c0_i32_1 = arith.constant 0 : i32
    return %c0_i32, %c0_i32_0 : i32, i32
  }
  func.func @transform_14(%arg0: i32, %arg1: i32) -> (i32, i32) {
    %c0_i32 = arith.constant 0 : i32
    %c0_i32_0 = arith.constant 0 : i32
    %c0_i32_1 = arith.constant 0 : i32
    return %c0_i32, %c0_i32_0 : i32, i32
  }
  func.func @transform_15(%arg0: i32, %arg1: i32) -> (i32, i32) {
    %c0_i32 = arith.constant 0 : i32
    %c0_i32_0 = arith.constant 0 : i32
    %c0_i32_1 = arith.constant 0 : i32
    return %c0_i32, %c0_i32_0 : i32, i32
  }
  func.func @transform_16(%arg0: i32, %arg1: i32) -> (i32, i32) {
    %c0_i32 = arith.constant 0 : i32
    %c0_i32_0 = arith.constant 0 : i32
    %c0_i32_1 = arith.constant 0 : i32
    return %c0_i32, %c0_i32_0 : i32, i32
  }
  func.func @transform_17(%arg0: i32, %arg1: i32) -> (i32, i32, i32) {
    %c0_i32 = arith.constant 0 : i32
    %c0_i32_0 = arith.constant 0 : i32
    return %arg0, %arg1, %c0_i32 : i32, i32, i32
  }
}

</mosaic_0001>

<llo_original>
// kernel: tpu_custom_call.1
$region0: #{tpu_custom_call.1}
  #allocation0 [shape = 'u32[]', space=smem, size = 0x4, offset = 0x4, fixed_abs, tag = 'smem constant byte address 0x4 - core index']
  #allocation1 [shape = 'u32[144,128]{1,0:T(1,128)}', space=vmem, size = 0x12000, scoped, tag = 'internal scratch']
  #allocation2 [shape = 'f32[4,8,8]{2,1,0:T(8,128)}', space=vmem, size = 0x4000, scoped, tag = 'scratch operand']
  #allocation3 [shape = 'f32[4,16,8]{2,1,0:T(8,128)}', space=vmem, size = 0x8000, scoped, tag = 'scratch operand']
  #allocation4 [shape = 'f32[4,16,8]{2,1,0:T(8,128)}', space=vmem, size = 0x8000, scoped, tag = 'scratch operand']
  #allocation5 [shape = 'f32[8,32]{1,0:T(8,128)}', space=vmem, size = 0x1000, scoped, tag = 'scratch operand']
  %s0 = inlined_call_operand.vmem [shape: f32[2,16,32], index: 0, kind: input, shape index: {}]
  %s1 = inlined_call_operand.vmem [shape: f32[32,32], index: 1, kind: input, shape index: {}]
  %s2 = inlined_call_operand.vmem [shape: f32[1,32], index: 2, kind: input, shape index: {}]
  %s3 = inlined_call_operand.vmem [shape: f32[32,32], index: 3, kind: input, shape index: {}]
  %s4 = inlined_call_operand.vmem [shape: f32[1,32], index: 4, kind: input, shape index: {}]
  %s5 = inlined_call_operand.hbm [shape: f32[32,32], index: 5, kind: input, shape index: {}]
  %s6 = inlined_call_operand.vmem [shape: f32[1,32], index: 6, kind: input, shape index: {}]
  %s7 = inlined_call_operand.hbm [shape: f32[32,32], index: 7, kind: input, shape index: {}]
  %s8 = inlined_call_operand.vmem [shape: f32[1,32], index: 8, kind: input, shape index: {}]
  %s9 = inlined_call_operand.vmem [shape: f32[1,32], index: 9, kind: input, shape index: {}]
  %s10 = inlined_call_operand.vmem [shape: f32[1,32], index: 10, kind: input, shape index: {}]
  %s11 = inlined_call_operand.hbm [shape: f32[32,64], index: 11, kind: input, shape index: {}]
  %s12 = inlined_call_operand.vmem [shape: f32[1,64], index: 12, kind: input, shape index: {}]
  %s13 = inlined_call_operand.vmem [shape: f32[64,32], index: 13, kind: input, shape index: {}]
  %s14 = inlined_call_operand.vmem [shape: f32[1,32], index: 14, kind: input, shape index: {}]
  %s15 = inlined_call_operand.vmem [shape: f32[1,32], index: 15, kind: input, shape index: {}]
  %s16 = inlined_call_operand.vmem [shape: f32[1,32], index: 16, kind: input, shape index: {}]
  %s17 = inlined_call_operand.hbm [shape: f32[2,16,32], index: 17, kind: output, shape index: {}]
  %s18 = sld [smem:[#allocation0]]
  $region117: #{tpu_custom_call.1} parent=0
    _
  %s20 = ssub.s32 1, %s18
  %s21 = scalar_select 0, %s20, %s18
  $region1: #{tpu_custom_call.1} parent=0
    #allocation6 [shape = 'u8[16384]{0}', space=vmem, size = 0x4000, scoped, tag = 'input window, operand 5, single buffered']
    #allocation7 [shape = 's32[2]{0}', space=sflag, size = 0x8, scoped, tag = 'scoped memory for tpu_custom_call.1']
    #allocation8 [shape = 's32[2]{0}', space=sflag, size = 0x8, scoped, tag = 'scoped memory for tpu_custom_call.1']
    #allocation9 [shape = 'u8[16384]{0}', space=vmem, size = 0x4000, scoped, tag = 'input window, operand 7, single buffered']
    #allocation10 [shape = 's32[1]{0}', space=sflag, size = 0x4, scoped, tag = 'scoped memory for tpu_custom_call.1']
    #allocation11 [shape = 'u8[16384]{0}', space=vmem, size = 0x4000, scoped, tag = 'input window, operand 11, single buffered']
    #allocation12 [shape = 'u8[8192]{0}', space=vmem, size = 0x2000, scoped, tag = 'output window, operand 0']
    %22 = vsyncpa [#allocation7], 0
    %23 = vsyncpa [#allocation10], 0
    %24 = vsyncpa [#allocation8], 0
    %s25 = scalar_lea.sflag [#allocation8], 1
    %26 = vsyncpa %s25, 0
    loop: start=0, step=1, limit=6
    $region2: #{tpu_custom_call.1} parent=1 // loop_pre_header
      _
    $region3: #{tpu_custom_call.1} parent=1 // loop_header
      %s28 = sphi 0, %s32
      %p29 = scmp.ge.s32.totalorder %s28, 6
      %s35 = sphi 0, %s47
      %s36 = sphi 0, %s43
      %s37 = sphi 0, %s35
      %s38 = sphi 0, %s36
      %s39 = sphi 0, %s37
      %s40 = sphi 0, %s38
      %s50 = sphi 0, %s52
      %s53 = sphi 0, %s50
      %s54 = sphi 0, %s53
      %s70 = sphi 0, %s54
      %s74 = sphi 0, %s74
      %s76 = sphi 0, %s74
      %s77 = sphi 0, %s76
      %s91 = sphi 0, %s77
      %s95 = sphi 0, %s95
      %s97 = sphi 0, %s95
      %s98 = sphi 0, %s97
      %s112 = sphi 0, %s98
      %s116 = sphi 0, %s116
      %s118 = sphi 0, %s116
      %s119 = sphi 0, %s118
      %s133 = sphi 0, %s119
      %s137 = sphi 0, %s137
      %s139 = sphi 0, %s137
      %s140 = sphi 0, %s139
      %s154 = sphi 0, %s140
      %s158 = sphi 0, %s158
      %s160 = sphi 0, %s158
      %s161 = sphi 0, %s160
      %s175 = sphi 0, %s161
      %s179 = sphi 0, %s179
      %s181 = sphi 0, %s179
      %s182 = sphi 0, %s181
      %s196 = sphi 0, %s182
      %s200 = sphi 0, %s200
      %s202 = sphi 0, %s200
      %s203 = sphi 0, %s202
      %s217 = sphi 0, %s203
      %s221 = sphi 0, %s221
      %s223 = sphi 0, %s221
      %s224 = sphi 0, %s223
      %s238 = sphi 0, %s224
      %s242 = sphi 0, %s242
      %s244 = sphi 0, %s242
      %s245 = sphi 0, %s244
      %s259 = sphi 0, %s245
      %s263 = sphi 0, %s263
      %s265 = sphi 0, %s263
      %s266 = sphi 0, %s265
      %s280 = sphi 0, %s266
      %s284 = sphi 0, %s284
      %s286 = sphi 0, %s284
      %s287 = sphi 0, %s286
      %s301 = sphi 0, %s287
      %s305 = sphi 0, %s305
      %s307 = sphi 0, %s305
      %s308 = sphi 0, %s307
      %s322 = sphi 0, %s308
      %s326 = sphi 0, %s326
      %s328 = sphi 0, %s326
      %s329 = sphi 0, %s328
      %s343 = sphi 0, %s329
      %s347 = sphi 0, %s347
      %s349 = sphi 0, %s347
      %s350 = sphi 0, %s349
      %s364 = sphi 0, %s350
      %s368 = sphi 0, %s368
      %s370 = sphi 0, %s368
      %s371 = sphi 0, %s370
      %s385 = sphi 0, %s371
      %s389 = sphi 0, %s389
      %s391 = sphi 0, %s389
      %s392 = sphi 0, %s391
      %s406 = sphi 0, %s392
      %s414 = sphi 0, %s416
      %s417 = sphi 0, %s414
      %s418 = sphi 0, %s417
      %s434 = sphi 0, %s418
    $region4: #{tpu_custom_call.1} parent=1 // loop_header_branch
      %31 = sbr.rel (%p29) target = $region8
    $region5: #{tpu_custom_call.1} parent=1 // loop_body
      %s33 = ssub.s32 %s28, 1
      %s34 = ssub.s32 %s28, 2
      %s41 = sadd.s32 1, %s36
      %p42 = scmp.ge.s32.totalorder %s41, 2
      %s43 = scalar_select %p42, 0, %s41
      %s44 = sadd.s32 1, %s35
      %s45 = scalar_select %p42, %s44, %s35
      %p46 = scmp.ge.s32.totalorder %s45, 2
      %s47 = scalar_select %p46, 0, %s45
      %s48 = ssub.s32 %s35, %s47
      %p49 = scmp.eq.s32.totalorder %s48, 0
      %s51 = sadd.s32 %s50, 1
      %s52 = scalar_select %p49, %s50, %s51
      %p55 = pneg %p49
      %p56 = scmp.eq.s32.totalorder %s28, 3
      %p57 = por %p55, %p56
      %p58 = scmp.ne.s32.totalorder %s50, %s53
      %p59 = scmp.eq.s32.totalorder %s28, 0
      %p60 = por %p58, %p59
      %p61 = scmp.ne.s32.totalorder %s50, %s53
      %p62 = scmp.eq.s32.totalorder %s33, 3
      %p63 = por %p61, %p62
      %p64 = scmp.ne.s32.totalorder %s53, %s54
      %p65 = scmp.eq.s32.totalorder %s33, 0
      %p66 = por %p64, %p65
      %p67 = scmp.ne.s32.totalorder %s53, %s54
      %p68 = scmp.eq.s32.totalorder %s34, 3
      %p69 = por %p67, %p68
      %p71 = scmp.ne.s32.totalorder %s54, %s70
      %p72 = scmp.eq.s32.totalorder %s34, 0
      %p73 = por %p71, %p72
      %s75 = sadd.s32 %s74, 1
      %p78 = scmp.eq.s32.totalorder %s28, 3
      %p79 = scmp.ne.s32.totalorder %s74, %s76
      %p80 = scmp.eq.s32.totalorder %s28, 0
      %p81 = por %p79, %p80
      %p82 = scmp.ne.s32.totalorder %s74, %s76
      %p83 = scmp.eq.s32.totalorder %s33, 3
      %p84 = por %p82, %p83
      %p85 = scmp.ne.s32.totalorder %s76, %s77
      %p86 = scmp.eq.s32.totalorder %s33, 0
      %p87 = por %p85, %p86
      %p88 = scmp.ne.s32.totalorder %s76, %s77
      %p89 = scmp.eq.s32.totalorder %s34, 3
      %p90 = por %p88, %p89
      %p92 = scmp.ne.s32.totalorder %s77, %s91
      %p93 = scmp.eq.s32.totalorder %s34, 0
      %p94 = por %p92, %p93
      %s96 = sadd.s32 %s95, 1
      %p99 = scmp.eq.s32.totalorder %s28, 3
      %p100 = scmp.ne.s32.totalorder %s95, %s97
      %p101 = scmp.eq.s32.totalorder %s28, 0
      %p102 = por %p100, %p101
      %p103 = scmp.ne.s32.totalorder %s95, %s97
      %p104 = scmp.eq.s32.totalorder %s33, 3
      %p105 = por %p103, %p104
      %p106 = scmp.ne.s32.totalorder %s97, %s98
      %p107 = scmp.eq.s32.totalorder %s33, 0
      %p108 = por %p106, %p107
      %p109 = scmp.ne.s32.totalorder %s97, %s98
      %p110 = scmp.eq.s32.totalorder %s34, 3
      %p111 = por %p109, %p110
      %p113 = scmp.ne.s32.totalorder %s98, %s112
      %p114 = scmp.eq.s32.totalorder %s34, 0
      %p115 = por %p113, %p114
      %s117 = sadd.s32 %s116, 1
      %p120 = scmp.eq.s32.totalorder %s28, 3
      %p121 = scmp.ne.s32.totalorder %s116, %s118
      %p122 = scmp.eq.s32.totalorder %s28, 0
      %p123 = por %p121, %p122
      %p124 = scmp.ne.s32.totalorder %s116, %s118
      %p125 = scmp.eq.s32.totalorder %s33, 3
      %p126 = por %p124, %p125
      %p127 = scmp.ne.s32.totalorder %s118, %s119
      %p128 = scmp.eq.s32.totalorder %s33, 0
      %p129 = por %p127, %p128
      %p130 = scmp.ne.s32.totalorder %s118, %s119
      %p131 = scmp.eq.s32.totalorder %s34, 3
      %p132 = por %p130, %p131
      %p134 = scmp.ne.s32.totalorder %s119, %s133
      %p135 = scmp.eq.s32.totalorder %s34, 0
      %p136 = por %p134, %p135
      %s138 = sadd.s32 %s137, 1
      %p141 = scmp.eq.s32.totalorder %s28, 3
      %p142 = scmp.ne.s32.totalorder %s137, %s139
      %p143 = scmp.eq.s32.totalorder %s28, 0
      %p144 = por %p142, %p143
      %p145 = scmp.ne.s32.totalorder %s137, %s139
      %p146 = scmp.eq.s32.totalorder %s33, 3
      %p147 = por %p145, %p146
      %p148 = scmp.ne.s32.totalorder %s139, %s140
      %p149 = scmp.eq.s32.totalorder %s33, 0
      %p150 = por %p148, %p149
      %p151 = scmp.ne.s32.totalorder %s139, %s140
      %p152 = scmp.eq.s32.totalorder %s34, 3
      %p153 = por %p151, %p152
      %p155 = scmp.ne.s32.totalorder %s140, %s154
      %p156 = scmp.eq.s32.totalorder %s34, 0
      %p157 = por %p155, %p156
      %s159 = sadd.s32 %s158, 1
      %p162 = scmp.eq.s32.totalorder %s28, 3
      %p163 = scmp.ne.s32.totalorder %s158, %s160
      %p164 = scmp.eq.s32.totalorder %s28, 0
      %p165 = por %p163, %p164
      %p166 = scmp.ne.s32.totalorder %s158, %s160
      %p167 = scmp.eq.s32.totalorder %s33, 3
      %p168 = por %p166, %p167
      %p169 = scmp.ne.s32.totalorder %s160, %s161
      %p170 = scmp.eq.s32.totalorder %s33, 0
      %p171 = por %p169, %p170
      %p172 = scmp.ne.s32.totalorder %s160, %s161
      %p173 = scmp.eq.s32.totalorder %s34, 3
      %p174 = por %p172, %p173
      %p176 = scmp.ne.s32.totalorder %s161, %s175
      %p177 = scmp.eq.s32.totalorder %s34, 0
      %p178 = por %p176, %p177
      %s180 = sadd.s32 %s179, 1
      %p183 = scmp.eq.s32.totalorder %s28, 3
      %p184 = scmp.ne.s32.totalorder %s179, %s181
      %p185 = scmp.eq.s32.totalorder %s28, 0
      %p186 = por %p184, %p185
      %p187 = scmp.ne.s32.totalorder %s179, %s181
      %p188 = scmp.eq.s32.totalorder %s33, 3
      %p189 = por %p187, %p188
      %p190 = scmp.ne.s32.totalorder %s181, %s182
      %p191 = scmp.eq.s32.totalorder %s33, 0
      %p192 = por %p190, %p191
      %p193 = scmp.ne.s32.totalorder %s181, %s182
      %p194 = scmp.eq.s32.totalorder %s34, 3
      %p195 = por %p193, %p194
      %p197 = scmp.ne.s32.totalorder %s182, %s196
      %p198 = scmp.eq.s32.totalorder %s34, 0
      %p199 = por %p197, %p198
      %s201 = sadd.s32 %s200, 1
      %p204 = scmp.eq.s32.totalorder %s28, 3
      %p205 = scmp.ne.s32.totalorder %s200, %s202
      %p206 = scmp.eq.s32.totalorder %s28, 0
      %p207 = por %p205, %p206
      %p208 = scmp.ne.s32.totalorder %s200, %s202
      %p209 = scmp.eq.s32.totalorder %s33, 3
      %p210 = por %p208, %p209
      %p211 = scmp.ne.s32.totalorder %s202, %s203
      %p212 = scmp.eq.s32.totalorder %s33, 0
      %p213 = por %p211, %p212
      %p214 = scmp.ne.s32.totalorder %s202, %s203
      %p215 = scmp.eq.s32.totalorder %s34, 3
      %p216 = por %p214, %p215
      %p218 = scmp.ne.s32.totalorder %s203, %s217
      %p219 = scmp.eq.s32.totalorder %s34, 0
      %p220 = por %p218, %p219
      %s222 = sadd.s32 %s221, 1
      %p225 = scmp.eq.s32.totalorder %s28, 3
      %p226 = scmp.ne.s32.totalorder %s221, %s223
      %p227 = scmp.eq.s32.totalorder %s28, 0
      %p228 = por %p226, %p227
      %p229 = scmp.ne.s32.totalorder %s221, %s223
      %p230 = scmp.eq.s32.totalorder %s33, 3
      %p231 = por %p229, %p230
      %p232 = scmp.ne.s32.totalorder %s223, %s224
      %p233 = scmp.eq.s32.totalorder %s33, 0
      %p234 = por %p232, %p233
      %p235 = scmp.ne.s32.totalorder %s223, %s224
      %p236 = scmp.eq.s32.totalorder %s34, 3
      %p237 = por %p235, %p236
      %p239 = scmp.ne.s32.totalorder %s224, %s238
      %p240 = scmp.eq.s32.totalorder %s34, 0
      %p241 = por %p239, %p240
      %s243 = sadd.s32 %s242, 1
      %p246 = scmp.eq.s32.totalorder %s28, 3
      %p247 = scmp.ne.s32.totalorder %s242, %s244
      %p248 = scmp.eq.s32.totalorder %s28, 0
      %p249 = por %p247, %p248
      %p250 = scmp.ne.s32.totalorder %s242, %s244
      %p251 = scmp.eq.s32.totalorder %s33, 3
      %p252 = por %p250, %p251
      %p253 = scmp.ne.s32.totalorder %s244, %s245
      %p254 = scmp.eq.s32.totalorder %s33, 0
      %p255 = por %p253, %p254
      %p256 = scmp.ne.s32.totalorder %s244, %s245
      %p257 = scmp.eq.s32.totalorder %s34, 3
      %p258 = por %p256, %p257
      %p260 = scmp.ne.s32.totalorder %s245, %s259
      %p261 = scmp.eq.s32.totalorder %s34, 0
      %p262 = por %p260, %p261
      %s264 = sadd.s32 %s263, 1
      %p267 = scmp.eq.s32.totalorder %s28, 3
      %p268 = scmp.ne.s32.totalorder %s263, %s265
      %p269 = scmp.eq.s32.totalorder %s28, 0
      %p270 = por %p268, %p269
      %p271 = scmp.ne.s32.totalorder %s263, %s265
      %p272 = scmp.eq.s32.totalorder %s33, 3
      %p273 = por %p271, %p272
      %p274 = scmp.ne.s32.totalorder %s265, %s266
      %p275 = scmp.eq.s32.totalorder %s33, 0
      %p276 = por %p274, %p275
      %p277 = scmp.ne.s32.totalorder %s265, %s266
      %p278 = scmp.eq.s32.totalorder %s34, 3
      %p279 = por %p277, %p278
      %p281 = scmp.ne.s32.totalorder %s266, %s280
      %p282 = scmp.eq.s32.totalorder %s34, 0
      %p283 = por %p281, %p282
      %s285 = sadd.s32 %s284, 1
      %p288 = scmp.eq.s32.totalorder %s28, 3
      %p289 = scmp.ne.s32.totalorder %s284, %s286
      %p290 = scmp.eq.s32.totalorder %s28, 0
      %p291 = por %p289, %p290
      %p292 = scmp.ne.s32.totalorder %s284, %s286
      %p293 = scmp.eq.s32.totalorder %s33, 3
      %p294 = por %p292, %p293
      %p295 = scmp.ne.s32.totalorder %s286, %s287
      %p296 = scmp.eq.s32.totalorder %s33, 0
      %p297 = por %p295, %p296
      %p298 = scmp.ne.s32.totalorder %s286, %s287
      %p299 = scmp.eq.s32.totalorder %s34, 3
      %p300 = por %p298, %p299
      %p302 = scmp.ne.s32.totalorder %s287, %s301
      %p303 = scmp.eq.s32.totalorder %s34, 0
      %p304 = por %p302, %p303
      %s306 = sadd.s32 %s305, 1
      %p309 = scmp.eq.s32.totalorder %s28, 3
      %p310 = scmp.ne.s32.totalorder %s305, %s307
      %p311 = scmp.eq.s32.totalorder %s28, 0
      %p312 = por %p310, %p311
      %p313 = scmp.ne.s32.totalorder %s305, %s307
      %p314 = scmp.eq.s32.totalorder %s33, 3
      %p315 = por %p313, %p314
      %p316 = scmp.ne.s32.totalorder %s307, %s308
      %p317 = scmp.eq.s32.totalorder %s33, 0
      %p318 = por %p316, %p317
      %p319 = scmp.ne.s32.totalorder %s307, %s308
      %p320 = scmp.eq.s32.totalorder %s34, 3
      %p321 = por %p319, %p320
      %p323 = scmp.ne.s32.totalorder %s308, %s322
      %p324 = scmp.eq.s32.totalorder %s34, 0
      %p325 = por %p323, %p324
      %s327 = sadd.s32 %s326, 1
      %p330 = scmp.eq.s32.totalorder %s28, 3
      %p331 = scmp.ne.s32.totalorder %s326, %s328
      %p332 = scmp.eq.s32.totalorder %s28, 0
      %p333 = por %p331, %p332
      %p334 = scmp.ne.s32.totalorder %s326, %s328
      %p335 = scmp.eq.s32.totalorder %s33, 3
      %p336 = por %p334, %p335
      %p337 = scmp.ne.s32.totalorder %s328, %s329
      %p338 = scmp.eq.s32.totalorder %s33, 0
      %p339 = por %p337, %p338
      %p340 = scmp.ne.s32.totalorder %s328, %s329
      %p341 = scmp.eq.s32.totalorder %s34, 3
      %p342 = por %p340, %p341
      %p344 = scmp.ne.s32.totalorder %s329, %s343
      %p345 = scmp.eq.s32.totalorder %s34, 0
      %p346 = por %p344, %p345
      %s348 = sadd.s32 %s347, 1
      %p351 = scmp.eq.s32.totalorder %s28, 3
      %p352 = scmp.ne.s32.totalorder %s347, %s349
      %p353 = scmp.eq.s32.totalorder %s28, 0
      %p354 = por %p352, %p353
      %p355 = scmp.ne.s32.totalorder %s347, %s349
      %p356 = scmp.eq.s32.totalorder %s33, 3
      %p357 = por %p355, %p356
      %p358 = scmp.ne.s32.totalorder %s349, %s350
      %p359 = scmp.eq.s32.totalorder %s33, 0
      %p360 = por %p358, %p359
      %p361 = scmp.ne.s32.totalorder %s349, %s350
      %p362 = scmp.eq.s32.totalorder %s34, 3
      %p363 = por %p361, %p362
      %p365 = scmp.ne.s32.totalorder %s350, %s364
      %p366 = scmp.eq.s32.totalorder %s34, 0
      %p367 = por %p365, %p366
      %s369 = sadd.s32 %s368, 1
      %p372 = scmp.eq.s32.totalorder %s28, 3
      %p373 = scmp.ne.s32.totalorder %s368, %s370
      %p374 = scmp.eq.s32.totalorder %s28, 0
      %p375 = por %p373, %p374
      %p376 = scmp.ne.s32.totalorder %s368, %s370
      %p377 = scmp.eq.s32.totalorder %s33, 3
      %p378 = por %p376, %p377
      %p379 = scmp.ne.s32.totalorder %s370, %s371
      %p380 = scmp.eq.s32.totalorder %s33, 0
      %p381 = por %p379, %p380
      %p382 = scmp.ne.s32.totalorder %s370, %s371
      %p383 = scmp.eq.s32.totalorder %s34, 3
      %p384 = por %p382, %p383
      %p386 = scmp.ne.s32.totalorder %s371, %s385
      %p387 = scmp.eq.s32.totalorder %s34, 0
      %p388 = por %p386, %p387
      %s390 = sadd.s32 %s389, 1
      %p393 = scmp.eq.s32.totalorder %s28, 3
      %p394 = scmp.ne.s32.totalorder %s389, %s391
      %p395 = scmp.eq.s32.totalorder %s28, 0
      %p396 = por %p394, %p395
      %p397 = scmp.ne.s32.totalorder %s389, %s391
      %p398 = scmp.eq.s32.totalorder %s33, 3
      %p399 = por %p397, %p398
      %p400 = scmp.ne.s32.totalorder %s391, %s392
      %p401 = scmp.eq.s32.totalorder %s33, 0
      %p402 = por %p400, %p401
      %p403 = scmp.ne.s32.totalorder %s391, %s392
      %p404 = scmp.eq.s32.totalorder %s34, 3
      %p405 = por %p403, %p404
      %p407 = scmp.ne.s32.totalorder %s392, %s406
      %p408 = scmp.eq.s32.totalorder %s34, 0
      %p409 = por %p407, %p408
      %s410 = ssub.s32 %s35, %s47
      %s411 = ssub.s32 %s36, %s43
      %s412 = sor.u32 %s410, %s411
      %p413 = scmp.eq.s32.totalorder %s412, 0
      %s415 = sadd.s32 %s414, 1
      %s416 = scalar_select %p413, %s414, %s415
      %p419 = pneg %p413
      %p420 = scmp.eq.s32.totalorder %s28, 3
      %p421 = por %p419, %p420
      %p422 = scmp.ne.s32.totalorder %s414, %s417
      %p423 = scmp.eq.s32.totalorder %s28, 0
      %p424 = por %p422, %p423
      %p425 = scmp.ne.s32.totalorder %s414, %s417
      %p426 = scmp.eq.s32.totalorder %s33, 3
      %p427 = por %p425, %p426
      %p428 = scmp.ne.s32.totalorder %s417, %s418
      %p429 = scmp.eq.s32.totalorder %s33, 0
      %p430 = por %p428, %p429
      %p431 = scmp.ne.s32.totalorder %s417, %s418
      %p432 = scmp.eq.s32.totalorder %s34, 3
      %p433 = por %p431, %p432
      %p435 = scmp.ne.s32.totalorder %s418, %s434
      %p436 = scmp.eq.s32.totalorder %s34, 0
      %p437 = por %p435, %p436
      %p438 = scmp.le.s32.totalorder 1, %s28
      %p439 = scmp.lt.s32.totalorder %s28, 5
      %p440 = pnand %p438, %p439
      %p441 = pneg %p440
      // Predicated region
      $region9: #{tpu_custom_call.1} parent=5 // pred_check
        _
      $region10: #{tpu_custom_call.1} parent=5 // pred_check_branch
        %443 = sbr.rel (%p440) target = $region12
      $region11: #{tpu_custom_call.1} parent=5 // pred_region
        %s444 = ssub.s32 %s28, 1
        // Predicated region
        $region13: #{tpu_custom_call.1} parent=11 // pred_check
          %p445 = pneg %p87
        $region14: #{tpu_custom_call.1} parent=11 // pred_check_branch
          %447 = sbr.rel (%p445) target = $region16
        $region15: #{tpu_custom_call.1} parent=11 // pred_region
          _
        $region16: #{tpu_custom_call.1} parent=11 // pred_fallthru
          _
        // Predicated region
        $region17: #{tpu_custom_call.1} parent=11 // pred_check
          %p448 = pneg %p108
        $region18: #{tpu_custom_call.1} parent=11 // pred_check_branch
          %450 = sbr.rel (%p448) target = $region20
        $region19: #{tpu_custom_call.1} parent=11 // pred_region
          _
        $region20: #{tpu_custom_call.1} parent=11 // pred_fallthru
          _
        // Predicated region
        $region21: #{tpu_custom_call.1} parent=11 // pred_check
          %p451 = pneg %p129
        $region22: #{tpu_custom_call.1} parent=11 // pred_check_branch
          %453 = sbr.rel (%p451) target = $region24
        $region23: #{tpu_custom_call.1} parent=11 // pred_region
          _
        $region24: #{tpu_custom_call.1} parent=11 // pred_fallthru
          _
        // Predicated region
        $region25: #{tpu_custom_call.1} parent=11 // pred_check
          %p454 = pneg %p150
        $region26: #{tpu_custom_call.1} parent=11 // pred_check_branch
          %456 = sbr.rel (%p454) target = $region28
        $region27: #{tpu_custom_call.1} parent=11 // pred_region
          _
        $region28: #{tpu_custom_call.1} parent=11 // pred_fallthru
          _
        // Predicated region
        $region29: #{tpu_custom_call.1} parent=11 // pred_check
          %p457 = pneg %p171
        $region30: #{tpu_custom_call.1} parent=11 // pred_check_branch
          %459 = sbr.rel (%p457) target = $region32
        $region31: #{tpu_custom_call.1} parent=11 // pred_region
          %s461 = ssub.s32 512, 512
          %462 = vsyncadd [#allocation7], %s461
          %s463 = sshll.u32 [#allocation6], 4
          %s464 = int_to_ptr.vmem [resolvable:$true] %s463
          %469 = dma.hbm_to_vmem [thread:$0]  %s5, 512, %s464, [#allocation7], 128, 128, 8
        $region32: #{tpu_custom_call.1} parent=11 // pred_fallthru
          _
        // Predicated region
        $region33: #{tpu_custom_call.1} parent=11 // pred_check
          %p470 = pneg %p192
        $region34: #{tpu_custom_call.1} parent=11 // pred_check_branch
          %472 = sbr.rel (%p470) target = $region36
        $region35: #{tpu_custom_call.1} parent=11 // pred_region
          _
        $region36: #{tpu_custom_call.1} parent=11 // pred_fallthru
          _
        // Predicated region
        $region37: #{tpu_custom_call.1} parent=11 // pred_check
          %p473 = pneg %p213
        $region38: #{tpu_custom_call.1} parent=11 // pred_check_branch
          %475 = sbr.rel (%p473) target = $region40
        $region39: #{tpu_custom_call.1} parent=11 // pred_region
          %s477 = ssub.s32 512, 512
          %478 = vsyncadd [#allocation10], %s477
          %s479 = sshll.u32 [#allocation9], 4
          %s480 = int_to_ptr.vmem [resolvable:$true] %s479
          %485 = dma.hbm_to_vmem [thread:$0]  %s7, 512, %s480, [#allocation10], 128, 128, 8
        $region40: #{tpu_custom_call.1} parent=11 // pred_fallthru
          _
        // Predicated region
        $region41: #{tpu_custom_call.1} parent=11 // pred_check
          %p486 = pneg %p234
        $region42: #{tpu_custom_call.1} parent=11 // pred_check_branch
          %488 = sbr.rel (%p486) target = $region44
        $region43: #{tpu_custom_call.1} parent=11 // pred_region
          _
        $region44: #{tpu_custom_call.1} parent=11 // pred_fallthru
          _
        // Predicated region
        $region45: #{tpu_custom_call.1} parent=11 // pred_check
          %p489 = pneg %p255
        $region46: #{tpu_custom_call.1} parent=11 // pred_check_branch
          %491 = sbr.rel (%p489) target = $region48
        $region47: #{tpu_custom_call.1} parent=11 // pred_region
          _
        $region48: #{tpu_custom_call.1} parent=11 // pred_fallthru
          _
        // Predicated region
        $region49: #{tpu_custom_call.1} parent=11 // pred_check
          %p492 = pneg %p276
        $region50: #{tpu_custom_call.1} parent=11 // pred_check_branch
          %494 = sbr.rel (%p492) target = $region52
        $region51: #{tpu_custom_call.1} parent=11 // pred_region
          _
        $region52: #{tpu_custom_call.1} parent=11 // pred_fallthru
          _
        // Predicated region
        $region53: #{tpu_custom_call.1} parent=11 // pred_check
          %p495 = pneg %p297
        $region54: #{tpu_custom_call.1} parent=11 // pred_check_branch
          %497 = sbr.rel (%p495) target = $region56
        $region55: #{tpu_custom_call.1} parent=11 // pred_region
          %s499 = ssub.s32 512, 512
          %500 = vsyncadd [#allocation10], %s499
          %s501 = sshll.u32 [#allocation11], 4
          %s502 = int_to_ptr.vmem [resolvable:$true] %s501
          %507 = dma.hbm_to_vmem [thread:$0]  %s11, 512, %s502, [#allocation10], 128, 128, 8
        $region56: #{tpu_custom_call.1} parent=11 // pred_fallthru
          _
        // Predicated region
        $region57: #{tpu_custom_call.1} parent=11 // pred_check
          %p508 = pneg %p318
        $region58: #{tpu_custom_call.1} parent=11 // pred_check_branch
          %510 = sbr.rel (%p508) target = $region60
        $region59: #{tpu_custom_call.1} parent=11 // pred_region
          _
        $region60: #{tpu_custom_call.1} parent=11 // pred_fallthru
          _
        // Predicated region
        $region61: #{tpu_custom_call.1} parent=11 // pred_check
          %p511 = pneg %p339
        $region62: #{tpu_custom_call.1} parent=11 // pred_check_branch
          %513 = sbr.rel (%p511) target = $region64
        $region63: #{tpu_custom_call.1} parent=11 // pred_region
          _
        $region64: #{tpu_custom_call.1} parent=11 // pred_fallthru
          _
        // Predicated region
        $region65: #{tpu_custom_call.1} parent=11 // pred_check
          %p514 = pneg %p360
        $region66: #{tpu_custom_call.1} parent=11 // pred_check_branch
          %516 = sbr.rel (%p514) target = $region68
        $region67: #{tpu_custom_call.1} parent=11 // pred_region
          _
        $region68: #{tpu_custom_call.1} parent=11 // pred_fallthru
          _
        // Predicated region
        $region69: #{tpu_custom_call.1} parent=11 // pred_check
          %p517 = pneg %p381
        $region70: #{tpu_custom_call.1} parent=11 // pred_check_branch
          %519 = sbr.rel (%p517) target = $region72
        $region71: #{tpu_custom_call.1} parent=11 // pred_region
          _
        $region72: #{tpu_custom_call.1} parent=11 // pred_fallthru
          _
        // Predicated region
        $region73: #{tpu_custom_call.1} parent=11 // pred_check
          %p520 = pneg %p402
        $region74: #{tpu_custom_call.1} parent=11 // pred_check_branch
          %522 = sbr.rel (%p520) target = $region76
        $region75: #{tpu_custom_call.1} parent=11 // pred_region
          _
        $region76: #{tpu_custom_call.1} parent=11 // pred_fallthru
          _
      $region12: #{tpu_custom_call.1} parent=5 // pred_fallthru
        _
      %p523 = scmp.lt.s32.totalorder %s28, 4
      // Predicated region
      $region77: #{tpu_custom_call.1} parent=5 // pred_check
        %p524 = pneg %p523
      $region78: #{tpu_custom_call.1} parent=5 // pred_check_branch
        %526 = sbr.rel (%p524) target = $region80
      $region79: #{tpu_custom_call.1} parent=5 // pred_region
        // Predicated region
        $region81: #{tpu_custom_call.1} parent=79 // pred_check
          %p527 = pneg %p60
        $region82: #{tpu_custom_call.1} parent=79 // pred_check_branch
          %529 = sbr.rel (%p527) target = $region84
        $region83: #{tpu_custom_call.1} parent=79 // pred_region
          %p530 = scmp.lt.s32.totalorder %s35, 1
          %s531 = scalar_select %p530, %s35, 1
          %s532 = smul.addr %s531, 2
          %s533 = smul.addr %s532, 8
          %s534 = scalar_lea.vmem %s0, %s533
        $region84: #{tpu_custom_call.1} parent=79 // pred_fallthru
          _
      $region80: #{tpu_custom_call.1} parent=5 // pred_fallthru
        _
      %p535 = scmp.le.s32.totalorder 1, %s28
      %p536 = scmp.lt.s32.totalorder %s28, 5
      %p537 = pnand %p535, %p536
      %p538 = pneg %p537
      // Predicated region
      $region85: #{tpu_custom_call.1} parent=5 // pred_check
        _
      $region86: #{tpu_custom_call.1} parent=5 // pred_check_branch
        %540 = sbr.rel (%p537) target = $region88
      $region87: #{tpu_custom_call.1} parent=5 // pred_region
        %s541 = ssub.s32 %s28, 1
        // Predicated region
        $region89: #{tpu_custom_call.1} parent=87 // pred_check
          %p542 = pneg %p171
        $region90: #{tpu_custom_call.1} parent=87 // pred_check_branch
          %544 = sbr.rel (%p542) target = $region92
        $region91: #{tpu_custom_call.1} parent=87 // pred_region
          %545 = dma.done [#allocation7], 512
        $region92: #{tpu_custom_call.1} parent=87 // pred_fallthru
          _
        // Predicated region
        $region93: #{tpu_custom_call.1} parent=87 // pred_check
          %p546 = pneg %p213
        $region94: #{tpu_custom_call.1} parent=87 // pred_check_branch
          %548 = sbr.rel (%p546) target = $region96
        $region95: #{tpu_custom_call.1} parent=87 // pred_region
          %549 = dma.done [#allocation10], 512
        $region96: #{tpu_custom_call.1} parent=87 // pred_fallthru
          _
        // Predicated region
        $region97: #{tpu_custom_call.1} parent=87 // pred_check
          %p550 = pneg %p297
        $region98: #{tpu_custom_call.1} parent=87 // pred_check_branch
          %552 = sbr.rel (%p550) target = $region100
        $region99: #{tpu_custom_call.1} parent=87 // pred_region
          %553 = dma.done [#allocation10], 512
        $region100: #{tpu_custom_call.1} parent=87 // pred_fallthru
          _
        %p554 = scmp.lt.s32.totalorder %s37, 1
        %s555 = scalar_select %p554, %s37, 1
        %s556 = smul.addr %s555, 2
        %s557 = smul.addr %s556, 8
        %s558 = scalar_lea.vmem %s0, %s557
        %p559 = pneg %p66
        %p560 = pneg %p63
        %p561 = pneg %p87
        %p562 = pneg %p84
        %p563 = pneg %p108
        %p564 = pneg %p105
        %p565 = pneg %p129
        %p566 = pneg %p126
        %p567 = pneg %p150
        %p568 = pneg %p147
        %p569 = pneg %p171
        %p570 = pneg %p168
        %p571 = pneg %p192
        %p572 = pneg %p189
        %p573 = pneg %p213
        %p574 = pneg %p210
        %p575 = pneg %p234
        %p576 = pneg %p231
        %p577 = pneg %p255
        %p578 = pneg %p252
        %p579 = pneg %p276
        %p580 = pneg %p273
        %p581 = pneg %p297
        %p582 = pneg %p294
        %p583 = pneg %p318
        %p584 = pneg %p315
        %p585 = pneg %p339
        %p586 = pneg %p336
        %p587 = pneg %p360
        %p588 = pneg %p357
        %p589 = pneg %p381
        %p590 = pneg %p378
        %p591 = pneg %p402
        %p592 = pneg %p399
        %p593 = pneg %p430
        %p594 = pneg %p427
        %s595 = sand.u32 %s417, 1
        %s596 = scalar_lea.sflag [#allocation8], %s595
        %s597 = sand.u32 %s417, 1
        %s598 = smul.addr %s597, 8
        %s599 = scalar_lea.vmem [#allocation12], %s598
        %p600 = scmp.lt.s32.totalorder %s37, 1
        %s601 = scalar_select %p600, %s37, 1
        %s602 = smul.addr %s601, 2
        %s603 = smul.addr %s602, 8
        %s604 = scalar_lea.vmem %s0, %s603
        %v605 = vld [vmem:[%s2] sm:$0x1]
        %v606 = vld [vmem:[%s8] sm:$0x1]
        %v607 = vld [vmem:[%s9] sm:$0x1]
        %v608 = vld [vmem:[%s10] sm:$0x1]
        %v609 = vld [vmem:[%s15] sm:$0x1]
        %v610 = vld [vmem:[%s16] sm:$0x1]
        %v611 = vld [vmem:[%s12] sm:$0x1]
        %v612 = vld [vmem:[%s14] sm:$0x1]
        %p613 = scmp.eq.s32.totalorder %s38, 0
        // Predicated region
        $region101: #{tpu_custom_call.1} parent=87 // pred_check
          %p614 = pneg %p613
        $region102: #{tpu_custom_call.1} parent=87 // pred_check_branch
          %616 = sbr.rel (%p614) target = $region104
        $region103: #{tpu_custom_call.1} parent=87 // pred_region
          %v617 = vld [vmem:[%s604] sm:$0xff]
          %v618 = vld [vmem:[%s604 + $0x8] sm:$0xff]
          %v619 = vld [vmem:[%s3] sm:$0xff]
          %v620 = vld [vmem:[%s3 + $0x8] sm:$0xff]
          %v621 = vld [vmem:[%s3 + $0x10] sm:$0xff]
          %v622 = vld [vmem:[%s3 + $0x18] sm:$0xff]
          %v623 = vld [vmem:[%s4] sm:$0x1]
          %v625 = vlaneseq
          %v626 = vshrl.u32 %v625, 7
          %v627 = vsub.s32 0, %v626
          %v628 = vrot.slane %v623, %v627
          %vm630 = vcmask 261120
          %v632 = vsel %vm630, %v617, 0
          %v635 = vsel %vm630, %v618, 0
          %637 = vmatprep.subr.mxu0 0.0
          %638 = vmatpush1.msra.mxu0 %v619
          %639 = vmatprep.subr.mxu0 0.0
          %640 = vmatpush1.msra.mxu0 %v620
          %641 = vmatprep.subr.mxu0 0.0
          %642 = vmatpush1.msra.mxu0 %v621
          %643 = vmatprep.subr.mxu0 0.0
          %644 = vmatpush1.msra.mxu0 %v622
          %645 = vmatprep.subr.mxu0 0.0
          %646 = vmatpush1.msra.mxu0 0.0
          %647 = vmatprep.subr.mxu0 0.0
          %648 = vmatpush1.msra.mxu0 0.0
          %649 = vmatprep.subr.mxu0 0.0
          %650 = vmatpush1.msra.mxu0 0.0
          %651 = vmatprep.subr.mxu0 0.0
          %652 = vmatpush1.msra.mxu0 0.0
          %653 = vmatprep.subr.mxu0 0.0
          %654 = vmatpush1.msra.mxu0 0.0
          %655 = vmatprep.subr.mxu0 0.0
          %656 = vmatpush1.msra.mxu0 0.0
          %657 = vmatprep.subr.mxu0 0.0
          %658 = vmatpush1.msra.mxu0 0.0
          %659 = vmatprep.subr.mxu0 0.0
          %660 = vmatpush1.msra.mxu0 0.0
          %661 = vmatprep.subr.mxu0 0.0
          %662 = vmatpush1.msra.mxu0 0.0
          %663 = vmatprep.subr.mxu0 0.0
          %664 = vmatpush1.msra.mxu0 0.0
          %665 = vmatprep.subr.mxu0 0.0
          %666 = vmatpush1.msra.mxu0 0.0
          %667 = vmatprep.subr.mxu0 0.0
          %668 = vmatpush1.msra.mxu0 0.0
          %669 = vmatprep.subr.mxu0 0.0
          %670 = vmatpush1.msra.mxu0 0.0
          %671 = vmatprep.subr.mxu0 0.0
          %672 = vmatpush1.msra.mxu0 0.0
          %673 = vmatprep.subr.mxu0 0.0
          %674 = vmatpush1.msra.mxu0 0.0
          %675 = vmatprep.subr.mxu0 0.0
          %676 = vmatpush1.msra.mxu0 0.0
          %677 = vmatprep.subr.mxu0 0.0
          %678 = vmatpush1.msra.mxu0 0.0
          %679 = vmatprep.subr.mxu0 0.0
          %680 = vmatpush1.msra.mxu0 0.0
          %681 = vmatprep.subr.mxu0 0.0
          %682 = vmatpush1.msra.mxu0 0.0
          %683 = vmatprep.subr.mxu0 0.0
          %684 = vmatpush1.msra.mxu0 0.0
          %685 = vmatprep.subr.mxu0 0.0
          %686 = vmatpush1.msra.mxu0 0.0
          %687 = vmatprep.subr.mxu0 0.0
          %688 = vmatpush1.msra.mxu0 0.0
          %689 = vmatprep.subr.mxu0 0.0
          %690 = vmatpush1.msra.mxu0 0.0
          %691 = vmatprep.subr.mxu0 0.0
          %692 = vmatpush1.msra.mxu0 0.0
          %693 = vmatprep.subr.mxu0 0.0
          %694 = vmatpush1.msra.mxu0 0.0
          %695 = vmatprep.subr.mxu0 0.0
          %696 = vmatpush1.msra.mxu0 0.0
          %697 = vmatprep.subr.mxu0 0.0
          %698 = vmatpush1.msra.mxu0 0.0
          %699 = vmatprep.subr.mxu0 0.0
          %700 = vmatpush1.msra.mxu0 0.0
          %701 = vmatprep.mubr.f32.mxu0 0.0
          %702 = vmatmul.mubr.f32.gmra.mrb[0].mxu0 %v632
          %v703 = vpop.f32.mrb[0].mxu0
          %v704 = vadd.f32 %v628, %v703
          %v705 = vpop.f32.mrb[0].mxu0
          %706 = vmatprep.mubr.f32.mxu0 0.0
          %707 = vmatmul.mubr.f32.gmra.mrb[0].mxu0 %v635
          %v708 = vpop.f32.mrb[0].mxu0
          %v709 = vadd.f32 %v628, %v708
          %v710 = vpop.f32.mrb[0].mxu0
          %711 = vdwg.mxu0
          %v712 = vld [vmem:[#allocation6] sm:$0xff]
          %v713 = vld [vmem:[#allocation6 + $0x8] sm:$0xff]
          %v714 = vld [vmem:[#allocation6 + $0x10] sm:$0xff]
          %v715 = vld [vmem:[#allocation6 + $0x18] sm:$0xff]
          %v716 = vld [vmem:[%s6] sm:$0x1]
          %v718 = vlaneseq
          %v719 = vshrl.u32 %v718, 7
          %v720 = vsub.s32 0, %v719
          %v721 = vrot.slane %v716, %v720
          %723 = vmatprep.subr.mxu0 0.0
          %724 = vmatpush1.msra.mxu0 %v712
          %725 = vmatprep.subr.mxu0 0.0
          %726 = vmatpush1.msra.mxu0 %v713
          %727 = vmatprep.subr.mxu0 0.0
          %728 = vmatpush1.msra.mxu0 %v714
          %729 = vmatprep.subr.mxu0 0.0
          %730 = vmatpush1.msra.mxu0 %v715
          %731 = vmatprep.subr.mxu0 0.0
          %732 = vmatpush1.msra.mxu0 0.0
          %733 = vmatprep.subr.mxu0 0.0
          %734 = vmatpush1.msra.mxu0 0.0
          %735 = vmatprep.subr.mxu0 0.0
          %736 = vmatpush1.msra.mxu0 0.0
          %737 = vmatprep.subr.mxu0 0.0
          %738 = vmatpush1.msra.mxu0 0.0
          %739 = vmatprep.subr.mxu0 0.0
          %740 = vmatpush1.msra.mxu0 0.0
          %741 = vmatprep.subr.mxu0 0.0
          %742 = vmatpush1.msra.mxu0 0.0
          %743 = vmatprep.subr.mxu0 0.0
          %744 = vmatpush1.msra.mxu0 0.0
          %745 = vmatprep.subr.mxu0 0.0
          %746 = vmatpush1.msra.mxu0 0.0
          %747 = vmatprep.subr.mxu0 0.0
          %748 = vmatpush1.msra.mxu0 0.0
          %749 = vmatprep.subr.mxu0 0.0
          %750 = vmatpush1.msra.mxu0 0.0
          %751 = vmatprep.subr.mxu0 0.0
          %752 = vmatpush1.msra.mxu0 0.0
          %753 = vmatprep.subr.mxu0 0.0
          %754 = vmatpush1.msra.mxu0 0.0
          %755 = vmatprep.subr.mxu0 0.0
          %756 = vmatpush1.msra.mxu0 0.0
          %757 = vmatprep.subr.mxu0 0.0
          %758 = vmatpush1.msra.mxu0 0.0
          %759 = vmatprep.subr.mxu0 0.0
          %760 = vmatpush1.msra.mxu0 0.0
          %761 = vmatprep.subr.mxu0 0.0
          %762 = vmatpush1.msra.mxu0 0.0
          %763 = vmatprep.subr.mxu0 0.0
          %764 = vmatpush1.msra.mxu0 0.0
          %765 = vmatprep.subr.mxu0 0.0
          %766 = vmatpush1.msra.mxu0 0.0
          %767 = vmatprep.subr.mxu0 0.0
          %768 = vmatpush1.msra.mxu0 0.0
          %769 = vmatprep.subr.mxu0 0.0
          %770 = vmatpush1.msra.mxu0 0.0
          %771 = vmatprep.subr.mxu0 0.0
          %772 = vmatpush1.msra.mxu0 0.0
          %773 = vmatprep.subr.mxu0 0.0
          %774 = vmatpush1.msra.mxu0 0.0
          %775 = vmatprep.subr.mxu0 0.0
          %776 = vmatpush1.msra.mxu0 0.0
          %777 = vmatprep.subr.mxu0 0.0
          %778 = vmatpush1.msra.mxu0 0.0
          %779 = vmatprep.subr.mxu0 0.0
          %780 = vmatpush1.msra.mxu0 0.0
          %781 = vmatprep.subr.mxu0 0.0
          %782 = vmatpush1.msra.mxu0 0.0
          %783 = vmatprep.subr.mxu0 0.0
          %784 = vmatpush1.msra.mxu0 0.0
          %785 = vmatprep.subr.mxu0 0.0
          %786 = vmatpush1.msra.mxu0 0.0
          %787 = vmatprep.mubr.f32.mxu0 0.0
          %788 = vmatmul.mubr.f32.gmra.mrb[0].mxu0 %v632
          %v789 = vpop.f32.mrb[0].mxu0
          %v790 = vadd.f32 %v721, %v789
          %v791 = vpop.f32.mrb[0].mxu0
          %792 = vmatprep.mubr.f32.mxu0 0.0
          %793 = vmatmul.mubr.f32.gmra.mrb[0].mxu0 %v635
          %v794 = vpop.f32.mrb[0].mxu0
          %v795 = vadd.f32 %v721, %v794
          %v796 = vpop.f32.mrb[0].mxu0
          %797 = vdwg.mxu0
          %vm798 = vcmask 64512
          %799 = vst.msk [vmem:[#allocation3] sm:$0xff] %vm798, %v704
          %800 = vst.msk [vmem:[#allocation3 + $0x8] sm:$0xff] %vm798, %v709
          %801 = vst.msk [vmem:[#allocation4] sm:$0xff] %vm798, %v790
          %802 = vst.msk [vmem:[#allocation4 + $0x8] sm:$0xff] %vm798, %v795
          %805 = vrot.lane.b32.xlu0 %v704, 120
          %v806 = vpop.permute.xlu0 %805
          %807 = vrot.lane.b32.xlu0 %v709, 120
          %v808 = vpop.permute.xlu0 %807
          %s811 = scalar_lea.vmem [#allocation3], 16
          %812 = vst.msk [vmem:[%s811] sm:$0xff] %vm798, %v806
          %813 = vst.msk [vmem:[%s811 + $0x8] sm:$0xff] %vm798, %v808
          %816 = vrot.lane.b32.xlu0 %v790, 120
          %v817 = vpop.permute.xlu0 %816
          %818 = vrot.lane.b32.xlu0 %v795, 120
          %v819 = vpop.permute.xlu0 %818
          %s822 = scalar_lea.vmem [#allocation4], 16
          %823 = vst.msk [vmem:[%s822] sm:$0xff] %vm798, %v817
          %824 = vst.msk [vmem:[%s822 + $0x8] sm:$0xff] %vm798, %v819
          %825 = vrot.lane.b32.xlu0 %v704, 112
          %v826 = vpop.permute.xlu0 %825
          %827 = vrot.lane.b32.xlu0 %v709, 112
          %v828 = vpop.permute.xlu0 %827
          %s831 = scalar_lea.vmem [#allocation3], 32
          %832 = vst.msk [vmem:[%s831] sm:$0xff] %vm798, %v826
          %833 = vst.msk [vmem:[%s831 + $0x8] sm:$0xff] %vm798, %v828
          %834 = vrot.lane.b32.xlu0 %v790, 112
          %v835 = vpop.permute.xlu0 %834
          %836 = vrot.lane.b32.xlu0 %v795, 112
          %v837 = vpop.permute.xlu0 %836
          %s840 = scalar_lea.vmem [#allocation4], 32
          %841 = vst.msk [vmem:[%s840] sm:$0xff] %vm798, %v835
          %842 = vst.msk [vmem:[%s840 + $0x8] sm:$0xff] %vm798, %v837
          %843 = vrot.lane.b32.xlu0 %v704, 104
          %v844 = vpop.permute.xlu0 %843
          %845 = vrot.lane.b32.xlu0 %v709, 104
          %v846 = vpop.permute.xlu0 %845
          %s849 = scalar_lea.vmem [#allocation3], 48
          %850 = vst.msk [vmem:[%s849] sm:$0xff] %vm798, %v844
          %851 = vst.msk [vmem:[%s849 + $0x8] sm:$0xff] %vm798, %v846
          %852 = vrot.lane.b32.xlu0 %v790, 104
          %v853 = vpop.permute.xlu0 %852
          %854 = vrot.lane.b32.xlu0 %v795, 104
          %v855 = vpop.permute.xlu0 %854
          %s858 = scalar_lea.vmem [#allocation4], 48
          %859 = vst.msk [vmem:[%s858] sm:$0xff] %vm798, %v853
          %860 = vst.msk [vmem:[%s858 + $0x8] sm:$0xff] %vm798, %v855
        $region104: #{tpu_custom_call.1} parent=87 // pred_fallthru
          _
        %s861 = smul.u32 %s38, 8
        %s862 = scalar_lea.vmem %s604, %s861
        %v863 = vld [vmem:[%s862] sm:$0xff]
        %v864 = vld [vmem:[%s1] sm:$0xff]
        %v865 = vld [vmem:[%s1 + $0x8] sm:$0xff]
        %v866 = vld [vmem:[%s1 + $0x10] sm:$0xff]
        %v867 = vld [vmem:[%s1 + $0x18] sm:$0xff]
        %v869 = vlaneseq
        %v870 = vshrl.u32 %v869, 7
        %v871 = vsub.s32 0, %v870
        %v872 = vrot.slane %v605, %v871
        %vm874 = vcmask 261120
        %v876 = vsel %vm874, %v863, 0
        %878 = vmatprep.subr.mxu0 0.0
        %879 = vmatpush1.msra.mxu0 %v864
        %880 = vmatprep.subr.mxu0 0.0
        %881 = vmatpush1.msra.mxu0 %v865
        %882 = vmatprep.subr.mxu0 0.0
        %883 = vmatpush1.msra.mxu0 %v866
        %884 = vmatprep.subr.mxu0 0.0
        %885 = vmatpush1.msra.mxu0 %v867
        %886 = vmatprep.subr.mxu0 0.0
        %887 = vmatpush1.msra.mxu0 0.0
        %888 = vmatprep.subr.mxu0 0.0
        %889 = vmatpush1.msra.mxu0 0.0
        %890 = vmatprep.subr.mxu0 0.0
        %891 = vmatpush1.msra.mxu0 0.0
        %892 = vmatprep.subr.mxu0 0.0
        %893 = vmatpush1.msra.mxu0 0.0
        %894 = vmatprep.subr.mxu0 0.0
        %895 = vmatpush1.msra.mxu0 0.0
        %896 = vmatprep.subr.mxu0 0.0
        %897 = vmatpush1.msra.mxu0 0.0
        %898 = vmatprep.subr.mxu0 0.0
        %899 = vmatpush1.msra.mxu0 0.0
        %900 = vmatprep.subr.mxu0 0.0
        %901 = vmatpush1.msra.mxu0 0.0
        %902 = vmatprep.subr.mxu0 0.0
        %903 = vmatpush1.msra.mxu0 0.0
        %904 = vmatprep.subr.mxu0 0.0
        %905 = vmatpush1.msra.mxu0 0.0
        %906 = vmatprep.subr.mxu0 0.0
        %907 = vmatpush1.msra.mxu0 0.0
        %908 = vmatprep.subr.mxu0 0.0
        %909 = vmatpush1.msra.mxu0 0.0
        %910 = vmatprep.subr.mxu0 0.0
        %911 = vmatpush1.msra.mxu0 0.0
        %912 = vmatprep.subr.mxu0 0.0
        %913 = vmatpush1.msra.mxu0 0.0
        %914 = vmatprep.subr.mxu0 0.0
        %915 = vmatpush1.msra.mxu0 0.0
        %916 = vmatprep.subr.mxu0 0.0
        %917 = vmatpush1.msra.mxu0 0.0
        %918 = vmatprep.subr.mxu0 0.0
        %919 = vmatpush1.msra.mxu0 0.0
        %920 = vmatprep.subr.mxu0 0.0
        %921 = vmatpush1.msra.mxu0 0.0
        %922 = vmatprep.subr.mxu0 0.0
        %923 = vmatpush1.msra.mxu0 0.0
        %924 = vmatprep.subr.mxu0 0.0
        %925 = vmatpush1.msra.mxu0 0.0
        %926 = vmatprep.subr.mxu0 0.0
        %927 = vmatpush1.msra.mxu0 0.0
        %928 = vmatprep.subr.mxu0 0.0
        %929 = vmatpush1.msra.mxu0 0.0
        %930 = vmatprep.subr.mxu0 0.0
        %931 = vmatpush1.msra.mxu0 0.0
        %932 = vmatprep.subr.mxu0 0.0
        %933 = vmatpush1.msra.mxu0 0.0
        %934 = vmatprep.subr.mxu0 0.0
        %935 = vmatpush1.msra.mxu0 0.0
        %936 = vmatprep.subr.mxu0 0.0
        %937 = vmatpush1.msra.mxu0 0.0
        %938 = vmatprep.subr.mxu0 0.0
        %939 = vmatpush1.msra.mxu0 0.0
        %940 = vmatprep.subr.mxu0 0.0
        %941 = vmatpush1.msra.mxu0 0.0
        %942 = vmatprep.mubr.f32.mxu0 0.0
        %943 = vmatmul.mubr.f32.gmra.mrb[0].mxu0 %v876
        %v944 = vpop.f32.mrb[0].mxu0
        %v945 = vadd.f32 %v872, %v944
        %v946 = vpop.f32.mrb[0].mxu0
        %947 = vdwg.mxu0
        %v948 = vmul.f32 %v945, 0.35355338
        %vm949 = vcmask 64512
        %950 = vst.msk [vmem:[#allocation2] sm:$0xff] %vm949, %v948
        %952 = vrot.lane.b32.xlu0 %v948, 120
        %v953 = vpop.permute.xlu0 %952
        %s955 = scalar_lea.vmem [#allocation2], 8
        %956 = vst.msk [vmem:[%s955] sm:$0xff] %vm949, %v953
        %957 = vrot.lane.b32.xlu0 %v948, 112
        %v958 = vpop.permute.xlu0 %957
        %s960 = scalar_lea.vmem [#allocation2], 16
        %961 = vst.msk [vmem:[%s960] sm:$0xff] %vm949, %v958
        %962 = vrot.lane.b32.xlu0 %v948, 104
        %v963 = vpop.permute.xlu0 %962
        %s965 = scalar_lea.vmem [#allocation2], 24
        %966 = vst.msk [vmem:[%s965] sm:$0xff] %vm949, %v963
        %v967 = vld [vmem:[#allocation2] sm:$0xff]
        %v968 = vld [vmem:[#allocation2 + $0x8] sm:$0xff]
        %v969 = vld [vmem:[#allocation2 + $0x10] sm:$0xff]
        %v970 = vld [vmem:[#allocation2 + $0x18] sm:$0xff]
        %v971 = vld [vmem:[#allocation3] sm:$0xff]
        %v972 = vld [vmem:[#allocation3 + $0x8] sm:$0xff]
        %v973 = vld [vmem:[#allocation3 + $0x10] sm:$0xff]
        %v974 = vld [vmem:[#allocation3 + $0x18] sm:$0xff]
        %v975 = vld [vmem:[#allocation3 + $0x20] sm:$0xff]
        %v976 = vld [vmem:[#allocation3 + $0x28] sm:$0xff]
        %v977 = vld [vmem:[#allocation3 + $0x30] sm:$0xff]
        %v978 = vld [vmem:[#allocation3 + $0x38] sm:$0xff]
        %v980 = vsel %vm949, %v967, 0
        %v983 = vsel %vm949, %v971, 0
        %v986 = vsel %vm949, %v972, 0
        %988 = vmatprep.subr.mxu0 0.0
        %989 = vmatpush1.xpose.msra.mxu0 %v983
        %990 = vmatprep.subr.mxu0 0.0
        %991 = vmatpush1.xpose.msra.mxu0 %v986
        %992 = vmatprep.subr.mxu0 0.0
        %993 = vmatpush1.xpose.msra.mxu0 0.0
        %994 = vmatprep.subr.mxu0 0.0
        %995 = vmatpush1.xpose.msra.mxu0 0.0
        %996 = vmatprep.subr.mxu0 0.0
        %997 = vmatpush1.xpose.msra.mxu0 0.0
        %998 = vmatprep.subr.mxu0 0.0
        %999 = vmatpush1.xpose.msra.mxu0 0.0
        %1000 = vmatprep.subr.mxu0 0.0
        %1001 = vmatpush1.xpose.msra.mxu0 0.0
        %1002 = vmatprep.subr.mxu0 0.0
        %1003 = vmatpush1.xpose.msra.mxu0 0.0
        %1004 = vmatprep.subr.mxu0 0.0
        %1005 = vmatpush1.xpose.msra.mxu0 0.0
        %1006 = vmatprep.subr.mxu0 0.0
        %1007 = vmatpush1.xpose.msra.mxu0 0.0
        %1008 = vmatprep.subr.mxu0 0.0
        %1009 = vmatpush1.xpose.msra.mxu0 0.0
        %1010 = vmatprep.subr.mxu0 0.0
        %1011 = vmatpush1.xpose.msra.mxu0 0.0
        %1012 = vmatprep.subr.mxu0 0.0
        %1013 = vmatpush1.xpose.msra.mxu0 0.0
        %1014 = vmatprep.subr.mxu0 0.0
        %1015 = vmatpush1.xpose.msra.mxu0 0.0
        %1016 = vmatprep.subr.mxu0 0.0
        %1017 = vmatpush1.xpose.msra.mxu0 0.0
        %1018 = vmatprep.subr.mxu0 0.0
        %1019 = vmatpush1.xpose.msra.mxu0 0.0
        %1020 = vmatprep.subr.mxu0 0.0
        %1021 = vmatpush1.xpose.msra.mxu0 0.0
        %1022 = vmatprep.subr.mxu0 0.0
        %1023 = vmatpush1.xpose.msra.mxu0 0.0
        %1024 = vmatprep.subr.mxu0 0.0
        %1025 = vmatpush1.xpose.msra.mxu0 0.0
        %1026 = vmatprep.subr.mxu0 0.0
        %1027 = vmatpush1.xpose.msra.mxu0 0.0
        %1028 = vmatprep.subr.mxu0 0.0
        %1029 = vmatpush1.xpose.msra.mxu0 0.0
        %1030 = vmatprep.subr.mxu0 0.0
        %1031 = vmatpush1.xpose.msra.mxu0 0.0
        %1032 = vmatprep.subr.mxu0 0.0
        %1033 = vmatpush1.xpose.msra.mxu0 0.0
        %1034 = vmatprep.subr.mxu0 0.0
        %1035 = vmatpush1.xpose.msra.mxu0 0.0
        %1036 = vmatprep.subr.mxu0 0.0
        %1037 = vmatpush1.xpose.msra.mxu0 0.0
        %1038 = vmatprep.subr.mxu0 0.0
        %1039 = vmatpush1.xpose.msra.mxu0 0.0
        %1040 = vmatprep.subr.mxu0 0.0
        %1041 = vmatpush1.xpose.msra.mxu0 0.0
        %1042 = vmatprep.subr.mxu0 0.0
        %1043 = vmatpush1.xpose.msra.mxu0 0.0
        %1044 = vmatprep.subr.mxu0 0.0
        %1045 = vmatpush1.xpose.msra.mxu0 0.0
        %1046 = vmatprep.subr.mxu0 0.0
        %1047 = vmatpush1.xpose.msra.mxu0 0.0
        %1048 = vmatprep.subr.mxu0 0.0
        %1049 = vmatpush1.xpose.msra.mxu0 0.0
        %1050 = vmatprep.subr.mxu0 0.0
        %1051 = vmatpush1.xpose.msra.mxu0 0.0
        %1052 = vmatprep.mubr.f32.mxu0 0.0
        %1053 = vmatmul.mubr.f32.gmra.mrb[0].mxu0 %v980
        %v1054 = vpop.f32.mrb[0].mxu0
        %v1055 = vadd.f32 0.0, %v1054
        %v1056 = vpop.f32.mrb[0].mxu0
        %1057 = vdwg.mxu0
        %v1059 = vsel %vm949, %v968, 0
        %v1062 = vsel %vm949, %v973, 0
        %v1065 = vsel %vm949, %v974, 0
        %1067 = vmatprep.subr.mxu0 0.0
        %1068 = vmatpush1.xpose.msra.mxu0 %v1062
        %1069 = vmatprep.subr.mxu0 0.0
        %1070 = vmatpush1.xpose.msra.mxu0 %v1065
        %1071 = vmatprep.subr.mxu0 0.0
        %1072 = vmatpush1.xpose.msra.mxu0 0.0
        %1073 = vmatprep.subr.mxu0 0.0
        %1074 = vmatpush1.xpose.msra.mxu0 0.0
        %1075 = vmatprep.subr.mxu0 0.0
        %1076 = vmatpush1.xpose.msra.mxu0 0.0
        %1077 = vmatprep.subr.mxu0 0.0
        %1078 = vmatpush1.xpose.msra.mxu0 0.0
        %1079 = vmatprep.subr.mxu0 0.0
        %1080 = vmatpush1.xpose.msra.mxu0 0.0
        %1081 = vmatprep.subr.mxu0 0.0
        %1082 = vmatpush1.xpose.msra.mxu0 0.0
        %1083 = vmatprep.subr.mxu0 0.0
        %1084 = vmatpush1.xpose.msra.mxu0 0.0
        %1085 = vmatprep.subr.mxu0 0.0
        %1086 = vmatpush1.xpose.msra.mxu0 0.0
        %1087 = vmatprep.subr.mxu0 0.0
        %1088 = vmatpush1.xpose.msra.mxu0 0.0
        %1089 = vmatprep.subr.mxu0 0.0
        %1090 = vmatpush1.xpose.msra.mxu0 0.0
        %1091 = vmatprep.subr.mxu0 0.0
        %1092 = vmatpush1.xpose.msra.mxu0 0.0
        %1093 = vmatprep.subr.mxu0 0.0
        %1094 = vmatpush1.xpose.msra.mxu0 0.0
        %1095 = vmatprep.subr.mxu0 0.0
        %1096 = vmatpush1.xpose.msra.mxu0 0.0
        %1097 = vmatprep.subr.mxu0 0.0
        %1098 = vmatpush1.xpose.msra.mxu0 0.0
        %1099 = vmatprep.subr.mxu0 0.0
        %1100 = vmatpush1.xpose.msra.mxu0 0.0
        %1101 = vmatprep.subr.mxu0 0.0
        %1102 = vmatpush1.xpose.msra.mxu0 0.0
        %1103 = vmatprep.subr.mxu0 0.0
        %1104 = vmatpush1.xpose.msra.mxu0 0.0
        %1105 = vmatprep.subr.mxu0 0.0
        %1106 = vmatpush1.xpose.msra.mxu0 0.0
        %1107 = vmatprep.subr.mxu0 0.0
        %1108 = vmatpush1.xpose.msra.mxu0 0.0
        %1109 = vmatprep.subr.mxu0 0.0
        %1110 = vmatpush1.xpose.msra.mxu0 0.0
        %1111 = vmatprep.subr.mxu0 0.0
        %1112 = vmatpush1.xpose.msra.mxu0 0.0
        %1113 = vmatprep.subr.mxu0 0.0
        %1114 = vmatpush1.xpose.msra.mxu0 0.0
        %1115 = vmatprep.subr.mxu0 0.0
        %1116 = vmatpush1.xpose.msra.mxu0 0.0
        %1117 = vmatprep.subr.mxu0 0.0
        %1118 = vmatpush1.xpose.msra.mxu0 0.0
        %1119 = vmatprep.subr.mxu0 0.0
        %1120 = vmatpush1.xpose.msra.mxu0 0.0
        %1121 = vmatprep.subr.mxu0 0.0
        %1122 = vmatpush1.xpose.msra.mxu0 0.0
        %1123 = vmatprep.subr.mxu0 0.0
        %1124 = vmatpush1.xpose.msra.mxu0 0.0
        %1125 = vmatprep.subr.mxu0 0.0
        %1126 = vmatpush1.xpose.msra.mxu0 0.0
        %1127 = vmatprep.subr.mxu0 0.0
        %1128 = vmatpush1.xpose.msra.mxu0 0.0
        %1129 = vmatprep.subr.mxu0 0.0
        %1130 = vmatpush1.xpose.msra.mxu0 0.0
        %1131 = vmatprep.mubr.f32.mxu0 0.0
        %1132 = vmatmul.mubr.f32.gmra.mrb[0].mxu0 %v1059
        %v1133 = vpop.f32.mrb[0].mxu0
        %v1134 = vadd.f32 0.0, %v1133
        %v1135 = vpop.f32.mrb[0].mxu0
        %1136 = vdwg.mxu0
        %v1138 = vsel %vm949, %v969, 0
        %v1141 = vsel %vm949, %v975, 0
        %v1144 = vsel %vm949, %v976, 0
        %1146 = vmatprep.subr.mxu0 0.0
        %1147 = vmatpush1.xpose.msra.mxu0 %v1141
        %1148 = vmatprep.subr.mxu0 0.0
        %1149 = vmatpush1.xpose.msra.mxu0 %v1144
        %1150 = vmatprep.subr.mxu0 0.0
        %1151 = vmatpush1.xpose.msra.mxu0 0.0
        %1152 = vmatprep.subr.mxu0 0.0
        %1153 = vmatpush1.xpose.msra.mxu0 0.0
        %1154 = vmatprep.subr.mxu0 0.0
        %1155 = vmatpush1.xpose.msra.mxu0 0.0
        %1156 = vmatprep.subr.mxu0 0.0
        %1157 = vmatpush1.xpose.msra.mxu0 0.0
        %1158 = vmatprep.subr.mxu0 0.0
        %1159 = vmatpush1.xpose.msra.mxu0 0.0
        %1160 = vmatprep.subr.mxu0 0.0
        %1161 = vmatpush1.xpose.msra.mxu0 0.0
        %1162 = vmatprep.subr.mxu0 0.0
        %1163 = vmatpush1.xpose.msra.mxu0 0.0
        %1164 = vmatprep.subr.mxu0 0.0
        %1165 = vmatpush1.xpose.msra.mxu0 0.0
        %1166 = vmatprep.subr.mxu0 0.0
        %1167 = vmatpush1.xpose.msra.mxu0 0.0
        %1168 = vmatprep.subr.mxu0 0.0
        %1169 = vmatpush1.xpose.msra.mxu0 0.0
        %1170 = vmatprep.subr.mxu0 0.0
        %1171 = vmatpush1.xpose.msra.mxu0 0.0
        %1172 = vmatprep.subr.mxu0 0.0
        %1173 = vmatpush1.xpose.msra.mxu0 0.0
        %1174 = vmatprep.subr.mxu0 0.0
        %1175 = vmatpush1.xpose.msra.mxu0 0.0
        %1176 = vmatprep.subr.mxu0 0.0
        %1177 = vmatpush1.xpose.msra.mxu0 0.0
        %1178 = vmatprep.subr.mxu0 0.0
        %1179 = vmatpush1.xpose.msra.mxu0 0.0
        %1180 = vmatprep.subr.mxu0 0.0
        %1181 = vmatpush1.xpose.msra.mxu0 0.0
        %1182 = vmatprep.subr.mxu0 0.0
        %1183 = vmatpush1.xpose.msra.mxu0 0.0
        %1184 = vmatprep.subr.mxu0 0.0
        %1185 = vmatpush1.xpose.msra.mxu0 0.0
        %1186 = vmatprep.subr.mxu0 0.0
        %1187 = vmatpush1.xpose.msra.mxu0 0.0
        %1188 = vmatprep.subr.mxu0 0.0
        %1189 = vmatpush1.xpose.msra.mxu0 0.0
        %1190 = vmatprep.subr.mxu0 0.0
        %1191 = vmatpush1.xpose.msra.mxu0 0.0
        %1192 = vmatprep.subr.mxu0 0.0
        %1193 = vmatpush1.xpose.msra.mxu0 0.0
        %1194 = vmatprep.subr.mxu0 0.0
        %1195 = vmatpush1.xpose.msra.mxu0 0.0
        %1196 = vmatprep.subr.mxu0 0.0
        %1197 = vmatpush1.xpose.msra.mxu0 0.0
        %1198 = vmatprep.subr.mxu0 0.0
        %1199 = vmatpush1.xpose.msra.mxu0 0.0
        %1200 = vmatprep.subr.mxu0 0.0
        %1201 = vmatpush1.xpose.msra.mxu0 0.0
        %1202 = vmatprep.subr.mxu0 0.0
        %1203 = vmatpush1.xpose.msra.mxu0 0.0
        %1204 = vmatprep.subr.mxu0 0.0
        %1205 = vmatpush1.xpose.msra.mxu0 0.0
        %1206 = vmatprep.subr.mxu0 0.0
        %1207 = vmatpush1.xpose.msra.mxu0 0.0
        %1208 = vmatprep.subr.mxu0 0.0
        %1209 = vmatpush1.xpose.msra.mxu0 0.0
        %1210 = vmatprep.mubr.f32.mxu0 0.0
        %1211 = vmatmul.mubr.f32.gmra.mrb[0].mxu0 %v1138
        %v1212 = vpop.f32.mrb[0].mxu0
        %v1213 = vadd.f32 0.0, %v1212
        %v1214 = vpop.f32.mrb[0].mxu0
        %1215 = vdwg.mxu0
        %v1217 = vsel %vm949, %v970, 0
        %v1220 = vsel %vm949, %v977, 0
        %v1223 = vsel %vm949, %v978, 0
        %1225 = vmatprep.subr.mxu0 0.0
        %1226 = vmatpush1.xpose.msra.mxu0 %v1220
        %1227 = vmatprep.subr.mxu0 0.0
        %1228 = vmatpush1.xpose.msra.mxu0 %v1223
        %1229 = vmatprep.subr.mxu0 0.0
        %1230 = vmatpush1.xpose.msra.mxu0 0.0
        %1231 = vmatprep.subr.mxu0 0.0
        %1232 = vmatpush1.xpose.msra.mxu0 0.0
        %1233 = vmatprep.subr.mxu0 0.0
        %1234 = vmatpush1.xpose.msra.mxu0 0.0
        %1235 = vmatprep.subr.mxu0 0.0
        %1236 = vmatpush1.xpose.msra.mxu0 0.0
        %1237 = vmatprep.subr.mxu0 0.0
        %1238 = vmatpush1.xpose.msra.mxu0 0.0
        %1239 = vmatprep.subr.mxu0 0.0
        %1240 = vmatpush1.xpose.msra.mxu0 0.0
        %1241 = vmatprep.subr.mxu0 0.0
        %1242 = vmatpush1.xpose.msra.mxu0 0.0
        %1243 = vmatprep.subr.mxu0 0.0
        %1244 = vmatpush1.xpose.msra.mxu0 0.0
        %1245 = vmatprep.subr.mxu0 0.0
        %1246 = vmatpush1.xpose.msra.mxu0 0.0
        %1247 = vmatprep.subr.mxu0 0.0
        %1248 = vmatpush1.xpose.msra.mxu0 0.0
        %1249 = vmatprep.subr.mxu0 0.0
        %1250 = vmatpush1.xpose.msra.mxu0 0.0
        %1251 = vmatprep.subr.mxu0 0.0
        %1252 = vmatpush1.xpose.msra.mxu0 0.0
        %1253 = vmatprep.subr.mxu0 0.0
        %1254 = vmatpush1.xpose.msra.mxu0 0.0
        %1255 = vmatprep.subr.mxu0 0.0
        %1256 = vmatpush1.xpose.msra.mxu0 0.0
        %1257 = vmatprep.subr.mxu0 0.0
        %1258 = vmatpush1.xpose.msra.mxu0 0.0
        %1259 = vmatprep.subr.mxu0 0.0
        %1260 = vmatpush1.xpose.msra.mxu0 0.0
        %1261 = vmatprep.subr.mxu0 0.0
        %1262 = vmatpush1.xpose.msra.mxu0 0.0
        %1263 = vmatprep.subr.mxu0 0.0
        %1264 = vmatpush1.xpose.msra.mxu0 0.0
        %1265 = vmatprep.subr.mxu0 0.0
        %1266 = vmatpush1.xpose.msra.mxu0 0.0
        %1267 = vmatprep.subr.mxu0 0.0
        %1268 = vmatpush1.xpose.msra.mxu0 0.0
        %1269 = vmatprep.subr.mxu0 0.0
        %1270 = vmatpush1.xpose.msra.mxu0 0.0
        %1271 = vmatprep.subr.mxu0 0.0
        %1272 = vmatpush1.xpose.msra.mxu0 0.0
        %1273 = vmatprep.subr.mxu0 0.0
        %1274 = vmatpush1.xpose.msra.mxu0 0.0
        %1275 = vmatprep.subr.mxu0 0.0
        %1276 = vmatpush1.xpose.msra.mxu0 0.0
        %1277 = vmatprep.subr.mxu0 0.0
        %1278 = vmatpush1.xpose.msra.mxu0 0.0
        %1279 = vmatprep.subr.mxu0 0.0
        %1280 = vmatpush1.xpose.msra.mxu0 0.0
        %1281 = vmatprep.subr.mxu0 0.0
        %1282 = vmatpush1.xpose.msra.mxu0 0.0
        %1283 = vmatprep.subr.mxu0 0.0
        %1284 = vmatpush1.xpose.msra.mxu0 0.0
        %1285 = vmatprep.subr.mxu0 0.0
        %1286 = vmatpush1.xpose.msra.mxu0 0.0
        %1287 = vmatprep.subr.mxu0 0.0
        %1288 = vmatpush1.xpose.msra.mxu0 0.0
        %1289 = vmatprep.mubr.f32.mxu0 0.0
        %1290 = vmatmul.mubr.f32.gmra.mrb[0].mxu0 %v1217
        %v1291 = vpop.f32.mrb[0].mxu0
        %v1292 = vadd.f32 0.0, %v1291
        %v1293 = vpop.f32.mrb[0].mxu0
        %1294 = vdwg.mxu0
        %vm1295 = vcmask 130048
        %v1296 = vsel %vm1295, %v1055, -inf
        %1297 = vmax.xlane.f32.xlu0 %v1296
        %v1298 = vpop.xlane.xlu0 %1297
        %v1299 = vsel %vm1295, %v1134, -inf
        %1300 = vmax.xlane.f32.xlu0 %v1299
        %v1301 = vpop.xlane.xlu0 %1300
        %v1302 = vsel %vm1295, %v1213, -inf
        %1303 = vmax.xlane.f32.xlu0 %v1302
        %v1304 = vpop.xlane.xlu0 %1303
        %v1305 = vsel %vm1295, %v1292, -inf
        %1306 = vmax.xlane.f32.xlu0 %v1305
        %v1307 = vpop.xlane.xlu0 %1306
        %v1308 = vsub.f32 %v1055, %v1298
        %v1309 = vsub.f32 %v1134, %v1301
        %v1310 = vsub.f32 %v1213, %v1304
        %v1311 = vsub.f32 %v1292, %v1307
        %v1312 = vmul.f32 %v1308, 1.442695
        %v1313 = vpow.pop %v1312
        %v1314 = vmul.f32 %v1309, 1.442695
        %v1315 = vpow.pop %v1314
        %v1316 = vmul.f32 %v1310, 1.442695
        %v1317 = vpow.pop %v1316
        %v1318 = vmul.f32 %v1311, 1.442695
        %v1319 = vpow.pop %v1318
        %v1320 = vsel %vm1295, %v1313, 0.0
        %1321 = vadd.xlane.f32.xlu0 %v1320
        %v1322 = vpop.xlane.xlu0 %1321
        %v1323 = vsel %vm1295, %v1315, 0.0
        %1324 = vadd.xlane.f32.xlu0 %v1323
        %v1325 = vpop.xlane.xlu0 %1324
        %v1326 = vsel %vm1295, %v1317, 0.0
        %1327 = vadd.xlane.f32.xlu0 %v1326
        %v1328 = vpop.xlane.xlu0 %1327
        %v1329 = vsel %vm1295, %v1319, 0.0
        %1330 = vadd.xlane.f32.xlu0 %v1329
        %v1331 = vpop.xlane.xlu0 %1330
        %v1332 = vrcp.pop %v1322
        %v1333 = vrcp.pop %v1325
        %v1334 = vrcp.pop %v1328
        %v1335 = vrcp.pop %v1331
        %v1336 = vmul.f32 %v1313, %v1332
        %v1337 = vmul.f32 %v1315, %v1333
        %v1338 = vmul.f32 %v1317, %v1334
        %v1339 = vmul.f32 %v1319, %v1335
        %v1340 = vld [vmem:[#allocation4] sm:$0xff]
        %v1341 = vld [vmem:[#allocation4 + $0x8] sm:$0xff]
        %v1342 = vld [vmem:[#allocation4 + $0x10] sm:$0xff]
        %v1343 = vld [vmem:[#allocation4 + $0x18] sm:$0xff]
        %v1344 = vld [vmem:[#allocation4 + $0x20] sm:$0xff]
        %v1345 = vld [vmem:[#allocation4 + $0x28] sm:$0xff]
        %v1346 = vld [vmem:[#allocation4 + $0x30] sm:$0xff]
        %v1347 = vld [vmem:[#allocation4 + $0x38] sm:$0xff]
        %v1349 = vsel %vm1295, %v1336, 0
        %1351 = vmatprep.subr.mxu0 0.0
        %1352 = vmatpush1.msra.mxu0 %v1340
        %1353 = vmatprep.subr.mxu0 0.0
        %1354 = vmatpush1.msra.mxu0 %v1341
        %1355 = vmatprep.subr.mxu0 0.0
        %1356 = vmatpush1.msra.mxu0 0.0
        %1357 = vmatprep.subr.mxu0 0.0
        %1358 = vmatpush1.msra.mxu0 0.0
        %1359 = vmatprep.subr.mxu0 0.0
        %1360 = vmatpush1.msra.mxu0 0.0
        %1361 = vmatprep.subr.mxu0 0.0
        %1362 = vmatpush1.msra.mxu0 0.0
        %1363 = vmatprep.subr.mxu0 0.0
        %1364 = vmatpush1.msra.mxu0 0.0
        %1365 = vmatprep.subr.mxu0 0.0
        %1366 = vmatpush1.msra.mxu0 0.0
        %1367 = vmatprep.subr.mxu0 0.0
        %1368 = vmatpush1.msra.mxu0 0.0
        %1369 = vmatprep.subr.mxu0 0.0
        %1370 = vmatpush1.msra.mxu0 0.0
        %1371 = vmatprep.subr.mxu0 0.0
        %1372 = vmatpush1.msra.mxu0 0.0
        %1373 = vmatprep.subr.mxu0 0.0
        %1374 = vmatpush1.msra.mxu0 0.0
        %1375 = vmatprep.subr.mxu0 0.0
        %1376 = vmatpush1.msra.mxu0 0.0
        %1377 = vmatprep.subr.mxu0 0.0
        %1378 = vmatpush1.msra.mxu0 0.0
        %1379 = vmatprep.subr.mxu0 0.0
        %1380 = vmatpush1.msra.mxu0 0.0
        %1381 = vmatprep.subr.mxu0 0.0
        %1382 = vmatpush1.msra.mxu0 0.0
        %1383 = vmatprep.subr.mxu0 0.0
        %1384 = vmatpush1.msra.mxu0 0.0
        %1385 = vmatprep.subr.mxu0 0.0
        %1386 = vmatpush1.msra.mxu0 0.0
        %1387 = vmatprep.subr.mxu0 0.0
        %1388 = vmatpush1.msra.mxu0 0.0
        %1389 = vmatprep.subr.mxu0 0.0
        %1390 = vmatpush1.msra.mxu0 0.0
        %1391 = vmatprep.subr.mxu0 0.0
        %1392 = vmatpush1.msra.mxu0 0.0
        %1393 = vmatprep.subr.mxu0 0.0
        %1394 = vmatpush1.msra.mxu0 0.0
        %1395 = vmatprep.subr.mxu0 0.0
        %1396 = vmatpush1.msra.mxu0 0.0
        %1397 = vmatprep.subr.mxu0 0.0
        %1398 = vmatpush1.msra.mxu0 0.0
        %1399 = vmatprep.subr.mxu0 0.0
        %1400 = vmatpush1.msra.mxu0 0.0
        %1401 = vmatprep.subr.mxu0 0.0
        %1402 = vmatpush1.msra.mxu0 0.0
        %1403 = vmatprep.subr.mxu0 0.0
        %1404 = vmatpush1.msra.mxu0 0.0
        %1405 = vmatprep.subr.mxu0 0.0
        %1406 = vmatpush1.msra.mxu0 0.0
        %1407 = vmatprep.subr.mxu0 0.0
        %1408 = vmatpush1.msra.mxu0 0.0
        %1409 = vmatprep.subr.mxu0 0.0
        %1410 = vmatpush1.msra.mxu0 0.0
        %1411 = vmatprep.subr.mxu0 0.0
        %1412 = vmatpush1.msra.mxu0 0.0
        %1413 = vmatprep.subr.mxu0 0.0
        %1414 = vmatpush1.msra.mxu0 0.0
        %1415 = vmatprep.mubr.f32.mxu0 0.0
        %1416 = vmatmul.mubr.f32.gmra.mrb[0].mxu0 %v1349
        %v1417 = vpop.f32.mrb[0].mxu0
        %v1418 = vadd.f32 0.0, %v1417
        %v1419 = vpop.f32.mrb[0].mxu0
        %1420 = vdwg.mxu0
        %v1422 = vsel %vm1295, %v1337, 0
        %1424 = vmatprep.subr.mxu0 0.0
        %1425 = vmatpush1.msra.mxu0 %v1342
        %1426 = vmatprep.subr.mxu0 0.0
        %1427 = vmatpush1.msra.mxu0 %v1343
        %1428 = vmatprep.subr.mxu0 0.0
        %1429 = vmatpush1.msra.mxu0 0.0
        %1430 = vmatprep.subr.mxu0 0.0
        %1431 = vmatpush1.msra.mxu0 0.0
        %1432 = vmatprep.subr.mxu0 0.0
        %1433 = vmatpush1.msra.mxu0 0.0
        %1434 = vmatprep.subr.mxu0 0.0
        %1435 = vmatpush1.msra.mxu0 0.0
        %1436 = vmatprep.subr.mxu0 0.0
        %1437 = vmatpush1.msra.mxu0 0.0
        %1438 = vmatprep.subr.mxu0 0.0
        %1439 = vmatpush1.msra.mxu0 0.0
        %1440 = vmatprep.subr.mxu0 0.0
        %1441 = vmatpush1.msra.mxu0 0.0
        %1442 = vmatprep.subr.mxu0 0.0
        %1443 = vmatpush1.msra.mxu0 0.0
        %1444 = vmatprep.subr.mxu0 0.0
        %1445 = vmatpush1.msra.mxu0 0.0
        %1446 = vmatprep.subr.mxu0 0.0
        %1447 = vmatpush1.msra.mxu0 0.0
        %1448 = vmatprep.subr.mxu0 0.0
        %1449 = vmatpush1.msra.mxu0 0.0
        %1450 = vmatprep.subr.mxu0 0.0
        %1451 = vmatpush1.msra.mxu0 0.0
        %1452 = vmatprep.subr.mxu0 0.0
        %1453 = vmatpush1.msra.mxu0 0.0
        %1454 = vmatprep.subr.mxu0 0.0
        %1455 = vmatpush1.msra.mxu0 0.0
        %1456 = vmatprep.subr.mxu0 0.0
        %1457 = vmatpush1.msra.mxu0 0.0
        %1458 = vmatprep.subr.mxu0 0.0
        %1459 = vmatpush1.msra.mxu0 0.0
        %1460 = vmatprep.subr.mxu0 0.0
        %1461 = vmatpush1.msra.mxu0 0.0
        %1462 = vmatprep.subr.mxu0 0.0
        %1463 = vmatpush1.msra.mxu0 0.0
        %1464 = vmatprep.subr.mxu0 0.0
        %1465 = vmatpush1.msra.mxu0 0.0
        %1466 = vmatprep.subr.mxu0 0.0
        %1467 = vmatpush1.msra.mxu0 0.0
        %1468 = vmatprep.subr.mxu0 0.0
        %1469 = vmatpush1.msra.mxu0 0.0
        %1470 = vmatprep.subr.mxu0 0.0
        %1471 = vmatpush1.msra.mxu0 0.0
        %1472 = vmatprep.subr.mxu0 0.0
        %1473 = vmatpush1.msra.mxu0 0.0
        %1474 = vmatprep.subr.mxu0 0.0
        %1475 = vmatpush1.msra.mxu0 0.0
        %1476 = vmatprep.subr.mxu0 0.0
        %1477 = vmatpush1.msra.mxu0 0.0
        %1478 = vmatprep.subr.mxu0 0.0
        %1479 = vmatpush1.msra.mxu0 0.0
        %1480 = vmatprep.subr.mxu0 0.0
        %1481 = vmatpush1.msra.mxu0 0.0
        %1482 = vmatprep.subr.mxu0 0.0
        %1483 = vmatpush1.msra.mxu0 0.0
        %1484 = vmatprep.subr.mxu0 0.0
        %1485 = vmatpush1.msra.mxu0 0.0
        %1486 = vmatprep.subr.mxu0 0.0
        %1487 = vmatpush1.msra.mxu0 0.0
        %1488 = vmatprep.mubr.f32.mxu0 0.0
        %1489 = vmatmul.mubr.f32.gmra.mrb[0].mxu0 %v1422
        %v1490 = vpop.f32.mrb[0].mxu0
        %v1491 = vadd.f32 0.0, %v1490
        %v1492 = vpop.f32.mrb[0].mxu0
        %1493 = vdwg.mxu0
        %v1495 = vsel %vm1295, %v1338, 0
        %1497 = vmatprep.subr.mxu0 0.0
        %1498 = vmatpush1.msra.mxu0 %v1344
        %1499 = vmatprep.subr.mxu0 0.0
        %1500 = vmatpush1.msra.mxu0 %v1345
        %1501 = vmatprep.subr.mxu0 0.0
        %1502 = vmatpush1.msra.mxu0 0.0
        %1503 = vmatprep.subr.mxu0 0.0
        %1504 = vmatpush1.msra.mxu0 0.0
        %1505 = vmatprep.subr.mxu0 0.0
        %1506 = vmatpush1.msra.mxu0 0.0
        %1507 = vmatprep.subr.mxu0 0.0
        %1508 = vmatpush1.msra.mxu0 0.0
        %1509 = vmatprep.subr.mxu0 0.0
        %1510 = vmatpush1.msra.mxu0 0.0
        %1511 = vmatprep.subr.mxu0 0.0
        %1512 = vmatpush1.msra.mxu0 0.0
        %1513 = vmatprep.subr.mxu0 0.0
        %1514 = vmatpush1.msra.mxu0 0.0
        %1515 = vmatprep.subr.mxu0 0.0
        %1516 = vmatpush1.msra.mxu0 0.0
        %1517 = vmatprep.subr.mxu0 0.0
        %1518 = vmatpush1.msra.mxu0 0.0
        %1519 = vmatprep.subr.mxu0 0.0
        %1520 = vmatpush1.msra.mxu0 0.0
        %1521 = vmatprep.subr.mxu0 0.0
        %1522 = vmatpush1.msra.mxu0 0.0
        %1523 = vmatprep.subr.mxu0 0.0
        %1524 = vmatpush1.msra.mxu0 0.0
        %1525 = vmatprep.subr.mxu0 0.0
        %1526 = vmatpush1.msra.mxu0 0.0
        %1527 = vmatprep.subr.mxu0 0.0
        %1528 = vmatpush1.msra.mxu0 0.0
        %1529 = vmatprep.subr.mxu0 0.0
        %1530 = vmatpush1.msra.mxu0 0.0
        %1531 = vmatprep.subr.mxu0 0.0
        %1532 = vmatpush1.msra.mxu0 0.0
        %1533 = vmatprep.subr.mxu0 0.0
        %1534 = vmatpush1.msra.mxu0 0.0
        %1535 = vmatprep.subr.mxu0 0.0
        %1536 = vmatpush1.msra.mxu0 0.0
        %1537 = vmatprep.subr.mxu0 0.0
        %1538 = vmatpush1.msra.mxu0 0.0
        %1539 = vmatprep.subr.mxu0 0.0
        %1540 = vmatpush1.msra.mxu0 0.0
        %1541 = vmatprep.subr.mxu0 0.0
        %1542 = vmatpush1.msra.mxu0 0.0
        %1543 = vmatprep.subr.mxu0 0.0
        %1544 = vmatpush1.msra.mxu0 0.0
        %1545 = vmatprep.subr.mxu0 0.0
        %1546 = vmatpush1.msra.mxu0 0.0
        %1547 = vmatprep.subr.mxu0 0.0
        %1548 = vmatpush1.msra.mxu0 0.0
        %1549 = vmatprep.subr.mxu0 0.0
        %1550 = vmatpush1.msra.mxu0 0.0
        %1551 = vmatprep.subr.mxu0 0.0
        %1552 = vmatpush1.msra.mxu0 0.0
        %1553 = vmatprep.subr.mxu0 0.0
        %1554 = vmatpush1.msra.mxu0 0.0
        %1555 = vmatprep.subr.mxu0 0.0
        %1556 = vmatpush1.msra.mxu0 0.0
        %1557 = vmatprep.subr.mxu0 0.0
        %1558 = vmatpush1.msra.mxu0 0.0
        %1559 = vmatprep.subr.mxu0 0.0
        %1560 = vmatpush1.msra.mxu0 0.0
        %1561 = vmatprep.mubr.f32.mxu0 0.0
        %1562 = vmatmul.mubr.f32.gmra.mrb[0].mxu0 %v1495
        %v1563 = vpop.f32.mrb[0].mxu0
        %v1564 = vadd.f32 0.0, %v1563
        %v1565 = vpop.f32.mrb[0].mxu0
        %1566 = vdwg.mxu0
        %v1568 = vsel %vm1295, %v1339, 0
        %1570 = vmatprep.subr.mxu0 0.0
        %1571 = vmatpush1.msra.mxu0 %v1346
        %1572 = vmatprep.subr.mxu0 0.0
        %1573 = vmatpush1.msra.mxu0 %v1347
        %1574 = vmatprep.subr.mxu0 0.0
        %1575 = vmatpush1.msra.mxu0 0.0
        %1576 = vmatprep.subr.mxu0 0.0
        %1577 = vmatpush1.msra.mxu0 0.0
        %1578 = vmatprep.subr.mxu0 0.0
        %1579 = vmatpush1.msra.mxu0 0.0
        %1580 = vmatprep.subr.mxu0 0.0
        %1581 = vmatpush1.msra.mxu0 0.0
        %1582 = vmatprep.subr.mxu0 0.0
        %1583 = vmatpush1.msra.mxu0 0.0
        %1584 = vmatprep.subr.mxu0 0.0
        %1585 = vmatpush1.msra.mxu0 0.0
        %1586 = vmatprep.subr.mxu0 0.0
        %1587 = vmatpush1.msra.mxu0 0.0
        %1588 = vmatprep.subr.mxu0 0.0
        %1589 = vmatpush1.msra.mxu0 0.0
        %1590 = vmatprep.subr.mxu0 0.0
        %1591 = vmatpush1.msra.mxu0 0.0
        %1592 = vmatprep.subr.mxu0 0.0
        %1593 = vmatpush1.msra.mxu0 0.0
        %1594 = vmatprep.subr.mxu0 0.0
        %1595 = vmatpush1.msra.mxu0 0.0
        %1596 = vmatprep.subr.mxu0 0.0
        %1597 = vmatpush1.msra.mxu0 0.0
        %1598 = vmatprep.subr.mxu0 0.0
        %1599 = vmatpush1.msra.mxu0 0.0
        %1600 = vmatprep.subr.mxu0 0.0
        %1601 = vmatpush1.msra.mxu0 0.0
        %1602 = vmatprep.subr.mxu0 0.0
        %1603 = vmatpush1.msra.mxu0 0.0
        %1604 = vmatprep.subr.mxu0 0.0
        %1605 = vmatpush1.msra.mxu0 0.0
        %1606 = vmatprep.subr.mxu0 0.0
        %1607 = vmatpush1.msra.mxu0 0.0
        %1608 = vmatprep.subr.mxu0 0.0
        %1609 = vmatpush1.msra.mxu0 0.0
        %1610 = vmatprep.subr.mxu0 0.0
        %1611 = vmatpush1.msra.mxu0 0.0
        %1612 = vmatprep.subr.mxu0 0.0
        %1613 = vmatpush1.msra.mxu0 0.0
        %1614 = vmatprep.subr.mxu0 0.0
        %1615 = vmatpush1.msra.mxu0 0.0
        %1616 = vmatprep.subr.mxu0 0.0
        %1617 = vmatpush1.msra.mxu0 0.0
        %1618 = vmatprep.subr.mxu0 0.0
        %1619 = vmatpush1.msra.mxu0 0.0
        %1620 = vmatprep.subr.mxu0 0.0
        %1621 = vmatpush1.msra.mxu0 0.0
        %1622 = vmatprep.subr.mxu0 0.0
        %1623 = vmatpush1.msra.mxu0 0.0
        %1624 = vmatprep.subr.mxu0 0.0
        %1625 = vmatpush1.msra.mxu0 0.0
        %1626 = vmatprep.subr.mxu0 0.0
        %1627 = vmatpush1.msra.mxu0 0.0
        %1628 = vmatprep.subr.mxu0 0.0
        %1629 = vmatpush1.msra.mxu0 0.0
        %1630 = vmatprep.subr.mxu0 0.0
        %1631 = vmatpush1.msra.mxu0 0.0
        %1632 = vmatprep.subr.mxu0 0.0
        %1633 = vmatpush1.msra.mxu0 0.0
        %1634 = vmatprep.mubr.f32.mxu0 0.0
        %1635 = vmatmul.mubr.f32.gmra.mrb[0].mxu0 %v1568
        %v1636 = vpop.f32.mrb[0].mxu0
        %v1637 = vadd.f32 0.0, %v1636
        %v1638 = vpop.f32.mrb[0].mxu0
        %1639 = vdwg.mxu0
        %1640 = vst.msk [vmem:[#allocation5] sm:$0xff] %vm949, %v1418
        %1642 = vrot.lane.b32.xlu0 %v1491, 8
        %v1643 = vpop.permute.xlu0 %1642
        %vm1645 = vcmask 130112
        %1646 = vst.msk [vmem:[#allocation5] sm:$0xff] %vm1645, %v1643
        %1648 = vrot.lane.b32.xlu0 %v1564, 16
        %v1649 = vpop.permute.xlu0 %1648
        %vm1651 = vcmask 195712
        %1652 = vst.msk [vmem:[#allocation5] sm:$0xff] %vm1651, %v1649
        %1654 = vrot.lane.b32.xlu0 %v1637, 24
        %v1655 = vpop.permute.xlu0 %1654
        %vm1657 = vcmask 261312
        %1658 = vst.msk [vmem:[#allocation5] sm:$0xff] %vm1657, %v1655
        %v1659 = vld [vmem:[#allocation5] sm:$0xff]
        %v1660 = vld [vmem:[#allocation9] sm:$0xff]
        %v1661 = vld [vmem:[#allocation9 + $0x8] sm:$0xff]
        %v1662 = vld [vmem:[#allocation9 + $0x10] sm:$0xff]
        %v1663 = vld [vmem:[#allocation9 + $0x18] sm:$0xff]
        %v1665 = vlaneseq
        %v1666 = vshrl.u32 %v1665, 7
        %v1667 = vsub.s32 0, %v1666
        %v1668 = vrot.slane %v606, %v1667
        %v1671 = vsel %vm874, %v1659, 0
        %1673 = vmatprep.subr.mxu0 0.0
        %1674 = vmatpush1.msra.mxu0 %v1660
        %1675 = vmatprep.subr.mxu0 0.0
        %1676 = vmatpush1.msra.mxu0 %v1661
        %1677 = vmatprep.subr.mxu0 0.0
        %1678 = vmatpush1.msra.mxu0 %v1662
        %1679 = vmatprep.subr.mxu0 0.0
        %1680 = vmatpush1.msra.mxu0 %v1663
        %1681 = vmatprep.subr.mxu0 0.0
        %1682 = vmatpush1.msra.mxu0 0.0
        %1683 = vmatprep.subr.mxu0 0.0
        %1684 = vmatpush1.msra.mxu0 0.0
        %1685 = vmatprep.subr.mxu0 0.0
        %1686 = vmatpush1.msra.mxu0 0.0
        %1687 = vmatprep.subr.mxu0 0.0
        %1688 = vmatpush1.msra.mxu0 0.0
        %1689 = vmatprep.subr.mxu0 0.0
        %1690 = vmatpush1.msra.mxu0 0.0
        %1691 = vmatprep.subr.mxu0 0.0
        %1692 = vmatpush1.msra.mxu0 0.0
        %1693 = vmatprep.subr.mxu0 0.0
        %1694 = vmatpush1.msra.mxu0 0.0
        %1695 = vmatprep.subr.mxu0 0.0
        %1696 = vmatpush1.msra.mxu0 0.0
        %1697 = vmatprep.subr.mxu0 0.0
        %1698 = vmatpush1.msra.mxu0 0.0
        %1699 = vmatprep.subr.mxu0 0.0
        %1700 = vmatpush1.msra.mxu0 0.0
        %1701 = vmatprep.subr.mxu0 0.0
        %1702 = vmatpush1.msra.mxu0 0.0
        %1703 = vmatprep.subr.mxu0 0.0
        %1704 = vmatpush1.msra.mxu0 0.0
        %1705 = vmatprep.subr.mxu0 0.0
        %1706 = vmatpush1.msra.mxu0 0.0
        %1707 = vmatprep.subr.mxu0 0.0
        %1708 = vmatpush1.msra.mxu0 0.0
        %1709 = vmatprep.subr.mxu0 0.0
        %1710 = vmatpush1.msra.mxu0 0.0
        %1711 = vmatprep.subr.mxu0 0.0
        %1712 = vmatpush1.msra.mxu0 0.0
        %1713 = vmatprep.subr.mxu0 0.0
        %1714 = vmatpush1.msra.mxu0 0.0
        %1715 = vmatprep.subr.mxu0 0.0
        %1716 = vmatpush1.msra.mxu0 0.0
        %1717 = vmatprep.subr.mxu0 0.0
        %1718 = vmatpush1.msra.mxu0 0.0
        %1719 = vmatprep.subr.mxu0 0.0
        %1720 = vmatpush1.msra.mxu0 0.0
        %1721 = vmatprep.subr.mxu0 0.0
        %1722 = vmatpush1.msra.mxu0 0.0
        %1723 = vmatprep.subr.mxu0 0.0
        %1724 = vmatpush1.msra.mxu0 0.0
        %1725 = vmatprep.subr.mxu0 0.0
        %1726 = vmatpush1.msra.mxu0 0.0
        %1727 = vmatprep.subr.mxu0 0.0
        %1728 = vmatpush1.msra.mxu0 0.0
        %1729 = vmatprep.subr.mxu0 0.0
        %1730 = vmatpush1.msra.mxu0 0.0
        %1731 = vmatprep.subr.mxu0 0.0
        %1732 = vmatpush1.msra.mxu0 0.0
        %1733 = vmatprep.subr.mxu0 0.0
        %1734 = vmatpush1.msra.mxu0 0.0
        %1735 = vmatprep.subr.mxu0 0.0
        %1736 = vmatpush1.msra.mxu0 0.0
        %1737 = vmatprep.mubr.f32.mxu0 0.0
        %1738 = vmatmul.mubr.f32.gmra.mrb[0].mxu0 %v1671
        %v1739 = vpop.f32.mrb[0].mxu0
        %v1740 = vadd.f32 %v1668, %v1739
        %v1741 = vpop.f32.mrb[0].mxu0
        %1742 = vdwg.mxu0
        %v1743 = vadd.f32 %v1740, %v863
        %v1744 = vsel %vm874, %v1743, 0.0
        %1745 = vadd.xlane.f32.xlu0 %v1744
        %v1746 = vpop.xlane.xlu0 %1745
        %v1747 = vrcp.pop 32.0
        %v1748 = vmul.f32 %v1746, %v1747
        %v1749 = vsub.f32 %v1743, %v1748
        %v1750 = vmul.f32 %v1749, %v1749
        %v1751 = vsel %vm874, %v1750, 0.0
        %1752 = vadd.xlane.f32.xlu0 %v1751
        %v1753 = vpop.xlane.xlu0 %1752
        %v1754 = vmul.f32 %v1753, %v1747
        %v1755 = vadd.f32 %v1754, 1e-12
        %v1756 = vrsqrt.pop %v1755
        %v1757 = vmul.f32 %v1749, %v1756
        %v1759 = vlaneseq
        %v1760 = vshrl.u32 %v1759, 7
        %v1761 = vsub.s32 0, %v1760
        %v1762 = vrot.slane %v607, %v1761
        %v1764 = vmul.f32 %v1762, %v1757
        %v1766 = vlaneseq
        %v1767 = vshrl.u32 %v1766, 7
        %v1768 = vsub.s32 0, %v1767
        %v1769 = vrot.slane %v608, %v1768
        %v1771 = vadd.f32 %v1764, %v1769
        %v1772 = vld [vmem:[#allocation11] sm:$0xff]
        %v1773 = vld [vmem:[#allocation11 + $0x8] sm:$0xff]
        %v1774 = vld [vmem:[#allocation11 + $0x10] sm:$0xff]
        %v1775 = vld [vmem:[#allocation11 + $0x18] sm:$0xff]
        %v1777 = vlaneseq
        %v1778 = vshrl.u32 %v1777, 7
        %v1779 = vsub.s32 0, %v1778
        %v1780 = vrot.slane %v611, %v1779
        %v1783 = vsel %vm874, %v1771, 0
        %1785 = vmatprep.subr.mxu0 0.0
        %1786 = vmatpush1.msra.mxu0 %v1772
        %1787 = vmatprep.subr.mxu0 0.0
        %1788 = vmatpush1.msra.mxu0 %v1773
        %1789 = vmatprep.subr.mxu0 0.0
        %1790 = vmatpush1.msra.mxu0 %v1774
        %1791 = vmatprep.subr.mxu0 0.0
        %1792 = vmatpush1.msra.mxu0 %v1775
        %1793 = vmatprep.subr.mxu0 0.0
        %1794 = vmatpush1.msra.mxu0 0.0
        %1795 = vmatprep.subr.mxu0 0.0
        %1796 = vmatpush1.msra.mxu0 0.0
        %1797 = vmatprep.subr.mxu0 0.0
        %1798 = vmatpush1.msra.mxu0 0.0
        %1799 = vmatprep.subr.mxu0 0.0
        %1800 = vmatpush1.msra.mxu0 0.0
        %1801 = vmatprep.subr.mxu0 0.0
        %1802 = vmatpush1.msra.mxu0 0.0
        %1803 = vmatprep.subr.mxu0 0.0
        %1804 = vmatpush1.msra.mxu0 0.0
        %1805 = vmatprep.subr.mxu0 0.0
        %1806 = vmatpush1.msra.mxu0 0.0
        %1807 = vmatprep.subr.mxu0 0.0
        %1808 = vmatpush1.msra.mxu0 0.0
        %1809 = vmatprep.subr.mxu0 0.0
        %1810 = vmatpush1.msra.mxu0 0.0
        %1811 = vmatprep.subr.mxu0 0.0
        %1812 = vmatpush1.msra.mxu0 0.0
        %1813 = vmatprep.subr.mxu0 0.0
        %1814 = vmatpush1.msra.mxu0 0.0
        %1815 = vmatprep.subr.mxu0 0.0
        %1816 = vmatpush1.msra.mxu0 0.0
        %1817 = vmatprep.subr.mxu0 0.0
        %1818 = vmatpush1.msra.mxu0 0.0
        %1819 = vmatprep.subr.mxu0 0.0
        %1820 = vmatpush1.msra.mxu0 0.0
        %1821 = vmatprep.subr.mxu0 0.0
        %1822 = vmatpush1.msra.mxu0 0.0
        %1823 = vmatprep.subr.mxu0 0.0
        %1824 = vmatpush1.msra.mxu0 0.0
        %1825 = vmatprep.subr.mxu0 0.0
        %1826 = vmatpush1.msra.mxu0 0.0
        %1827 = vmatprep.subr.mxu0 0.0
        %1828 = vmatpush1.msra.mxu0 0.0
        %1829 = vmatprep.subr.mxu0 0.0
        %1830 = vmatpush1.msra.mxu0 0.0
        %1831 = vmatprep.subr.mxu0 0.0
        %1832 = vmatpush1.msra.mxu0 0.0
        %1833 = vmatprep.subr.mxu0 0.0
        %1834 = vmatpush1.msra.mxu0 0.0
        %1835 = vmatprep.subr.mxu0 0.0
        %1836 = vmatpush1.msra.mxu0 0.0
        %1837 = vmatprep.subr.mxu0 0.0
        %1838 = vmatpush1.msra.mxu0 0.0
        %1839 = vmatprep.subr.mxu0 0.0
        %1840 = vmatpush1.msra.mxu0 0.0
        %1841 = vmatprep.subr.mxu0 0.0
        %1842 = vmatpush1.msra.mxu0 0.0
        %1843 = vmatprep.subr.mxu0 0.0
        %1844 = vmatpush1.msra.mxu0 0.0
        %1845 = vmatprep.subr.mxu0 0.0
        %1846 = vmatpush1.msra.mxu0 0.0
        %1847 = vmatprep.subr.mxu0 0.0
        %1848 = vmatpush1.msra.mxu0 0.0
        %1849 = vmatprep.mubr.f32.mxu0 0.0
        %1850 = vmatmul.mubr.f32.gmra.mrb[0].mxu0 %v1783
        %v1851 = vpop.f32.mrb[0].mxu0
        %v1852 = vadd.f32 %v1780, %v1851
        %v1853 = vpop.f32.mrb[0].mxu0
        %1854 = vdwg.mxu0
        %v1855 = vmax.f32 %v1852, 0.0
        %v1856 = vld [vmem:[%s13] sm:$0xff]
        %v1857 = vld [vmem:[%s13 + $0x8] sm:$0xff]
        %v1858 = vld [vmem:[%s13 + $0x10] sm:$0xff]
        %v1859 = vld [vmem:[%s13 + $0x18] sm:$0xff]
        %v1860 = vld [vmem:[%s13 + $0x20] sm:$0xff]
        %v1861 = vld [vmem:[%s13 + $0x28] sm:$0xff]
        %v1862 = vld [vmem:[%s13 + $0x30] sm:$0xff]
        %v1863 = vld [vmem:[%s13 + $0x38] sm:$0xff]
        %v1865 = vlaneseq
        %v1866 = vshrl.u32 %v1865, 7
        %v1867 = vsub.s32 0, %v1866
        %v1868 = vrot.slane %v612, %v1867
        %vm1870 = vcmask 523264
        %v1872 = vsel %vm1870, %v1855, 0
        %1874 = vmatprep.subr.mxu0 0.0
        %1875 = vmatpush1.msra.mxu0 %v1856
        %1876 = vmatprep.subr.mxu0 0.0
        %1877 = vmatpush1.msra.mxu0 %v1857
        %1878 = vmatprep.subr.mxu0 0.0
        %1879 = vmatpush1.msra.mxu0 %v1858
        %1880 = vmatprep.subr.mxu0 0.0
        %1881 = vmatpush1.msra.mxu0 %v1859
        %1882 = vmatprep.subr.mxu0 0.0
        %1883 = vmatpush1.msra.mxu0 %v1860
        %1884 = vmatprep.subr.mxu0 0.0
        %1885 = vmatpush1.msra.mxu0 %v1861
        %1886 = vmatprep.subr.mxu0 0.0
        %1887 = vmatpush1.msra.mxu0 %v1862
        %1888 = vmatprep.subr.mxu0 0.0
        %1889 = vmatpush1.msra.mxu0 %v1863
        %1890 = vmatprep.subr.mxu0 0.0
        %1891 = vmatpush1.msra.mxu0 0.0
        %1892 = vmatprep.subr.mxu0 0.0
        %1893 = vmatpush1.msra.mxu0 0.0
        %1894 = vmatprep.subr.mxu0 0.0
        %1895 = vmatpush1.msra.mxu0 0.0
        %1896 = vmatprep.subr.mxu0 0.0
        %1897 = vmatpush1.msra.mxu0 0.0
        %1898 = vmatprep.subr.mxu0 0.0
        %1899 = vmatpush1.msra.mxu0 0.0
        %1900 = vmatprep.subr.mxu0 0.0
        %1901 = vmatpush1.msra.mxu0 0.0
        %1902 = vmatprep.subr.mxu0 0.0
        %1903 = vmatpush1.msra.mxu0 0.0
        %1904 = vmatprep.subr.mxu0 0.0
        %1905 = vmatpush1.msra.mxu0 0.0
        %1906 = vmatprep.subr.mxu0 0.0
        %1907 = vmatpush1.msra.mxu0 0.0
        %1908 = vmatprep.subr.mxu0 0.0
        %1909 = vmatpush1.msra.mxu0 0.0
        %1910 = vmatprep.subr.mxu0 0.0
        %1911 = vmatpush1.msra.mxu0 0.0
        %1912 = vmatprep.subr.mxu0 0.0
        %1913 = vmatpush1.msra.mxu0 0.0
        %1914 = vmatprep.subr.mxu0 0.0
        %1915 = vmatpush1.msra.mxu0 0.0
        %1916 = vmatprep.subr.mxu0 0.0
        %1917 = vmatpush1.msra.mxu0 0.0
        %1918 = vmatprep.subr.mxu0 0.0
        %1919 = vmatpush1.msra.mxu0 0.0
        %1920 = vmatprep.subr.mxu0 0.0
        %1921 = vmatpush1.msra.mxu0 0.0
        %1922 = vmatprep.subr.mxu0 0.0
        %1923 = vmatpush1.msra.mxu0 0.0
        %1924 = vmatprep.subr.mxu0 0.0
        %1925 = vmatpush1.msra.mxu0 0.0
        %1926 = vmatprep.subr.mxu0 0.0
        %1927 = vmatpush1.msra.mxu0 0.0
        %1928 = vmatprep.subr.mxu0 0.0
        %1929 = vmatpush1.msra.mxu0 0.0
        %1930 = vmatprep.subr.mxu0 0.0
        %1931 = vmatpush1.msra.mxu0 0.0
        %1932 = vmatprep.subr.mxu0 0.0
        %1933 = vmatpush1.msra.mxu0 0.0
        %1934 = vmatprep.subr.mxu0 0.0
        %1935 = vmatpush1.msra.mxu0 0.0
        %1936 = vmatprep.subr.mxu0 0.0
        %1937 = vmatpush1.msra.mxu0 0.0
        %1938 = vmatprep.mubr.f32.mxu0 0.0
        %1939 = vmatmul.mubr.f32.gmra.mrb[0].mxu0 %v1872
        %v1940 = vpop.f32.mrb[0].mxu0
        %v1941 = vadd.f32 %v1868, %v1940
        %v1942 = vpop.f32.mrb[0].mxu0
        %1943 = vdwg.mxu0
        %v1944 = vadd.f32 %v1941, %v1771
        %v1945 = vsel %vm874, %v1944, 0.0
        %1946 = vadd.xlane.f32.xlu0 %v1945
        %v1947 = vpop.xlane.xlu0 %1946
        %v1948 = vmul.f32 %v1947, %v1747
        %v1949 = vsub.f32 %v1944, %v1948
        %v1950 = vmul.f32 %v1949, %v1949
        %v1951 = vsel %vm874, %v1950, 0.0
        %1952 = vadd.xlane.f32.xlu0 %v1951
        %v1953 = vpop.xlane.xlu0 %1952
        %v1954 = vmul.f32 %v1953, %v1747
        %v1955 = vadd.f32 %v1954, 1e-12
        %v1956 = vrsqrt.pop %v1955
        %v1957 = vmul.f32 %v1949, %v1956
        %v1959 = vlaneseq
        %v1960 = vshrl.u32 %v1959, 7
        %v1961 = vsub.s32 0, %v1960
        %v1962 = vrot.slane %v609, %v1961
        %v1964 = vmul.f32 %v1962, %v1957
        %v1966 = vlaneseq
        %v1967 = vshrl.u32 %v1966, 7
        %v1968 = vsub.s32 0, %v1967
        %v1969 = vrot.slane %v610, %v1968
        %v1971 = vadd.f32 %v1964, %v1969
        %1972 = vst.msk [vmem:[%s599] sm:$0xff] %vm874, %v1971
        %s1973 = sand.u32 %s417, 1
        %s1974 = scalar_lea.sflag [#allocation8], %s1973
        %s1975 = sand.u32 %s417, 1
        %s1976 = smul.addr %s1975, 8
        %s1977 = scalar_lea.vmem [#allocation12], %s1976
        // Predicated region
        $region105: #{tpu_custom_call.1} parent=87 // pred_check
          %p1978 = pneg %p427
        $region106: #{tpu_custom_call.1} parent=87 // pred_check_branch
          %1980 = sbr.rel (%p1978) target = $region108
        $region107: #{tpu_custom_call.1} parent=87 // pred_region
          %s1982 = ssub.s32 128, 128
          %1983 = vsyncadd %s1974, %s1982
          %s1984 = smul.addr %s37, 2
          %s1985 = sadd.s32 %s38, %s1984
          %s1986 = smul.addr %s1985, 128
          %s1987 = scalar_lea.hbm %s17, %s1986
          %s1989 = sshll.u32 %s1977, 4
          %s1990 = int_to_ptr.vmem [resolvable:$true] %s1989
          %1992 = dma.vmem_to_hbm [thread:$0]  %s1990, 128, %s1987, %s1974
        $region108: #{tpu_custom_call.1} parent=87 // pred_fallthru
          _
      $region88: #{tpu_custom_call.1} parent=5 // pred_fallthru
        _
      %p1993 = scmp.le.s32.totalorder 2, %s28
      // Predicated region
      $region109: #{tpu_custom_call.1} parent=5 // pred_check
        %p1994 = pneg %p1993
      $region110: #{tpu_custom_call.1} parent=5 // pred_check_branch
        %1996 = sbr.rel (%p1994) target = $region112
      $region111: #{tpu_custom_call.1} parent=5 // pred_region
        %s1997 = ssub.s32 %s28, 2
        // Predicated region
        $region113: #{tpu_custom_call.1} parent=111 // pred_check
          %p1998 = pneg %p433
        $region114: #{tpu_custom_call.1} parent=111 // pred_check_branch
          %2000 = sbr.rel (%p1998) target = $region116
        $region115: #{tpu_custom_call.1} parent=111 // pred_region
          %s2001 = sand.u32 %s418, 1
          %s2002 = scalar_lea.sflag [#allocation8], %s2001
          %s2003 = sand.u32 %s418, 1
          %s2004 = smul.addr %s2003, 8
          %s2005 = scalar_lea.vmem [#allocation12], %s2004
          %2006 = dma.done %s2002, 128
        $region116: #{tpu_custom_call.1} parent=111 // pred_fallthru
          _
      $region112: #{tpu_custom_call.1} parent=5 // pred_fallthru
        _
    $region6: #{tpu_custom_call.1} parent=1 // loop_footer
      %s32 = sadd.s32 1, %s28
    $region7: #{tpu_custom_call.1} parent=1 // loop_footer_branch
      %27 = sbr.rel target = $region3
    $region8: #{tpu_custom_call.1} parent=1 // loop_exit
      _
    %2007 = vsyncpa [#allocation7], 1
    %s2008 = scalar_lea.sflag [#allocation7], 1
    %2009 = vsyncpa %s2008, 1
    %2010 = vsyncpa [#allocation10], 1
    %2011 = vsyncpa [#allocation8], 1
    %s2012 = scalar_lea.sflag [#allocation8], 1
    %2013 = vsyncpa %s2012, 1

</llo_original>
